<compile_context>
chip_gen: v7x
topology: tpu7x:2x2x1
jax: 0.10.0
libtpu: 0.0.40
codegen_flags: <defaults>
</compile_context>

<pallas_src>
import functools

import jax
import jax.numpy as jnp
from jax.experimental import pallas as pl
from jax.experimental.pallas import tpu as pltpu

MXU_DTYPE = jnp.float32   # set to jnp.bfloat16 on v6e / v7x
_LANE = 128


def _round_up(x, m):
    return ((x + m - 1) // m) * m


# ---------------- fused Pallas kernel ----------------

def fused_tagger_kernel(char_emb_ref, xw_ref, conv_w_ref, conv_b_ref,
                        w1w_ref, w1c_ref, b1_ref, w2_ref, b2_ref, out_ref,
                        *, B, W, Npad, L, K):
    """Char CNN (conv1d + ReLU + max over time) fused with the 2-layer MLP.

    char_emb_ref: (Lp*Npad, C)  padded char embeddings, row = t*Npad + (w*B + b)
    xw_ref:       (B, W*Dw)     flattened word-embedding part of the fc1 input
    conv_w_ref:   (K*C, Fp)     conv weight; row k*C+c <-> torch weight[f, c, k]
    conv_b_ref:   (1, Fp)       conv bias, zero-padded to Fp lanes
    w1w_ref:      (W*Dw, Hp)    fc1 rows for the word features
    w1c_ref:      (W*Fp, Hp)    fc1 rows for the char features (zero rows for pad lanes)
    b1_ref:       (1, Hp)
    w2_ref:       (Hp, Op)
    b2_ref:       (1, Op)
    out_ref:      (B, Op)       fc2 output; real logits live in the first O lanes
    """
    C = char_emb_ref.shape[1]
    Fp = conv_w_ref.shape[1]
    LN = L * Npad

    # --- char CNN: K tap-matmuls over all L*Npad (time, token) rows at once ---
    conv = jnp.dot(char_emb_ref[pl.ds(0, LN)], conv_w_ref[pl.ds(0, C)],
                   preferred_element_type=jnp.float32)
    for k in range(1, K):
        conv = conv + jnp.dot(char_emb_ref[pl.ds(k * Npad, LN)],
                              conv_w_ref[pl.ds(k * C, C)],
                              preferred_element_type=jnp.float32)
    conv = jnp.maximum(conv + conv_b_ref[...], 0.0)        # bias added once, ReLU once

    # max over time: sublane-aligned slices; ReLU >= 0 so no -inf init is needed
    feats = conv[0:Npad]
    for t in range(1, L):
        feats = jnp.maximum(feats, conv[t * Npad:(t + 1) * Npad])   # (Npad, Fp)

    # --- fused MLP: word part + per-window-position char part share one accumulator ---
    acc = jnp.dot(xw_ref[...], w1w_ref[...],
                  preferred_element_type=jnp.float32) + b1_ref[...]
    for w in range(W):
        acc = acc + jnp.dot(feats[w * B:(w + 1) * B],
                            w1c_ref[pl.ds(w * Fp, Fp)],
                            preferred_element_type=jnp.float32)
    h = jnp.tanh(acc)                                       # f32 elementwise
    out_ref[...] = jnp.dot(h, w2_ref[...],
                           preferred_element_type=jnp.float32) + b2_ref[...]


_VMEM = pl.BlockSpec(memory_space=pltpu.MemorySpace.VMEM)


# ---------------- parameter preparation (done once, outside the hot path) ----------------

def prepare_params(p, *, window_size):
    """Split / pad the PyTorch-equivalent parameters into the fused-kernel layout."""
    Dw = p["word_emb"].shape[1]
    K, C, F = p["conv_w"].shape
    H = p["fc1_w"].shape[1]
    O = p["fc2_w"].shape[1]
    W = window_size
    Fp, Hp, Op = _round_up(F, _LANE), _round_up(H, _LANE), _round_up(O, _LANE)

    conv_w = jnp.pad(p["conv_w"].reshape(K * C, F), ((0, 0), (0, Fp - F)))
    conv_b = jnp.pad(p["conv_b"], ((0, 0), (0, Fp - F)))

    fc1 = p["fc1_w"].reshape(W, Dw + F, H)
    fc1_word = jnp.pad(fc1[:, :Dw, :].reshape(W * Dw, H), ((0, 0), (0, Hp - H)))
    fc1_char = jnp.pad(fc1[:, Dw:, :], ((0, 0), (0, Fp - F), (0, Hp - H))).reshape(W * Fp, Hp)
    fc1_b = jnp.pad(p["fc1_b"], ((0, 0), (0, Hp - H)))

    fc2_w = jnp.pad(p["fc2_w"], ((0, Hp - H), (0, Op - O)))
    fc2_b = jnp.pad(p["fc2_b"], ((0, 0), (0, Op - O)))

    return {
        "word_emb": p["word_emb"], "char_emb": p["char_emb"],
        "conv_w": conv_w.astype(MXU_DTYPE), "conv_b": conv_b.astype(jnp.float32),
        "fc1_word": fc1_word.astype(MXU_DTYPE), "fc1_char": fc1_char.astype(MXU_DTYPE),
        "fc1_b": fc1_b.astype(jnp.float32),
        "fc2_w": fc2_w.astype(MXU_DTYPE), "fc2_b": fc2_b.astype(jnp.float32),
    }


# ---------------- forward ----------------

def tagger_forward(words, chars, prep, *, output_dim):
    B, W = words.shape
    L = chars.shape[2]
    Dw = prep["word_emb"].shape[1]
    C = prep["char_emb"].shape[1]
    KC, Fp = prep["conv_w"].shape
    K = KC // C
    pad = K // 2
    Lp = L + 2 * pad
    Op = prep["fc2_b"].shape[1]
    N = B * W
    Npad = _round_up(N, 8)

    # ---- XLA glue: embedding gathers, padding, layout (dropout = identity in eval) ----
    xw = jnp.take(prep["word_emb"], words, axis=0).reshape(B, W * Dw)

    ce = jnp.take(prep["char_emb"], chars, axis=0)                  # (B, W, L, C)
    ce = jnp.pad(ce, ((0, 0), (0, 0), (pad, pad), (0, 0)))          # (B, W, Lp, C)
    ce = jnp.transpose(ce, (2, 1, 0, 3)).reshape(Lp, N, C)          # token row n = w*B + b
    ce = jnp.pad(ce, ((0, 0), (0, Npad - N), (0, 0)))               # (Lp, Npad, C)
    ce = ce.reshape(Lp * Npad, C)

    kernel = functools.partial(fused_tagger_kernel, B=B, W=W, Npad=Npad, L=L, K=K)
    out = pl.pallas_call(
        kernel,
        out_shape=jax.ShapeDtypeStruct((B, Op), jnp.float32),
        in_specs=[_VMEM] * 9,
        out_specs=_VMEM,
    )(ce.astype(MXU_DTYPE), xw.astype(MXU_DTYPE),
      prep["conv_w"], prep["conv_b"],
      prep["fc1_word"], prep["fc1_char"], prep["fc1_b"],
      prep["fc2_w"], prep["fc2_b"])
    return out[:, :output_dim]


# ---------------- deterministic param init (PyTorch-equivalent layout) ----------------

def init_params(key, vocab_size, num_chars, char_dim, num_filters, kernel_size,
                word_dim, window_size, hidden_dim, output_dim):
    ks = jax.random.split(key, 8)
    d_in = window_size * (word_dim + num_filters)
    scale = 0.1
    return {
        "word_emb": scale * jax.random.normal(ks[0], (vocab_size, word_dim), jnp.float32),
        "char_emb": scale * jax.random.normal(ks[1], (num_chars, char_dim), jnp.float32),
        # conv weight stored as (K, C, F); PyTorch stores (F, C, K)
        "conv_w": scale * jax.random.normal(ks[2], (kernel_size, char_dim, num_filters), jnp.float32),
        "conv_b": scale * jax.random.normal(ks[3], (1, num_filters), jnp.float32),
        # Linear stored as (in, out); PyTorch stores (out, in) and does x @ W.T
        "fc1_w": scale * jax.random.normal(ks[4], (d_in, hidden_dim), jnp.float32),
        "fc1_b": scale * jax.random.normal(ks[5], (1, hidden_dim), jnp.float32),
        "fc2_w": scale * jax.random.normal(ks[6], (hidden_dim, output_dim), jnp.float32),
        "fc2_b": scale * jax.random.normal(ks[7], (1, output_dim), jnp.float32),
    }


# ---------------- main ----------------

if __name__ == "__main__":
    vocab_size = 100
    num_chars = 30
    char_embedding_dim = 16
    num_filters = 24
    kernel_size = 3
    word_embedding_dim = 32
    window_size = 5
    hidden_dim = 32
    output_dim = 5
    batch = 2
    max_word_len = 8

    key = jax.random.PRNGKey(0)
    k_params, k_words, k_chars = jax.random.split(key, 3)

    params = init_params(k_params, vocab_size, num_chars, char_embedding_dim,
                         num_filters, kernel_size, word_embedding_dim,
                         window_size, hidden_dim, output_dim)
    prep = prepare_params(params, window_size=window_size)

    words = jax.random.randint(k_words, (batch, window_size), 0, vocab_size, jnp.int32)
    chars = jax.random.randint(k_chars, (batch, window_size, max_word_len), 0,
                               num_chars, jnp.int32)

    fwd = jax.jit(functools.partial(tagger_forward, output_dim=output_dim))
    out = jax.block_until_ready(fwd(words, chars, prep))
    assert out.shape == (batch, output_dim), out.shape

    # reference check in plain JAX (same math as the PyTorch module, no Pallas)
    def ref_forward(words, chars, p):
        B, W = words.shape
        L = chars.shape[2]
        pad = kernel_size // 2
        we = jnp.take(p["word_emb"], words, axis=0)
        ce = jnp.take(p["char_emb"], chars.reshape(B * W, L), axis=0)
        ce = jnp.pad(ce, ((0, 0), (pad, pad), (0, 0)))
        conv = jnp.zeros((B * W, L, num_filters), jnp.float32)
        for k in range(kernel_size):
            conv = conv + jnp.einsum("nlc,cf->nlf", ce[:, k:k + L, :], p["conv_w"][k])
        conv = jnp.maximum(conv + p["conv_b"][None], 0.0)
        cf = jnp.max(conv, axis=1).reshape(B, W, -1)
        emb = jnp.concatenate([we, cf], axis=2).reshape(B, -1)
        h = jnp.tanh(emb @ p["fc1_w"] + p["fc1_b"])
        return h @ p["fc2_w"] + p["fc2_b"]

    ref = jax.block_until_ready(ref_forward(words, chars, params))
    assert jnp.allclose(out, ref, atol=1e-4, rtol=1e-4), (out, ref)

    print("KERNEL_OK")
</pallas_src>

<mosaic_0001>
module attributes {stable_mosaic.version = 11 : i64} {
  func.func @fused_tagger_kernel(%arg0: memref<160x16xf32, #tpu.memory_space<vmem>>, %arg1: memref<2x160xf32, #tpu.memory_space<vmem>>, %arg2: memref<48x128xf32, #tpu.memory_space<vmem>>, %arg3: memref<1x128xf32, #tpu.memory_space<vmem>>, %arg4: memref<160x128xf32, #tpu.memory_space<vmem>>, %arg5: memref<640x128xf32, #tpu.memory_space<vmem>>, %arg6: memref<1x128xf32, #tpu.memory_space<vmem>>, %arg7: memref<128x128xf32, #tpu.memory_space<vmem>>, %arg8: memref<1x128xf32, #tpu.memory_space<vmem>>, %arg9: memref<2x128xf32, #tpu.memory_space<vmem>>) attributes {dimension_semantics = [], scalar_prefetch = 0 : i64, scratch_operands = 0 : i64, tpu.core_type = #tpu.core_type<tc>} {
    %c0 = arith.constant 0 : index
    %c0_0 = arith.constant 0 : index
    %0 = vector.load %arg0[%c0, %c0_0] : memref<160x16xf32, #tpu.memory_space<vmem>>, vector<128x16xf32>
    %c0_1 = arith.constant 0 : index
    %c0_2 = arith.constant 0 : index
    %1 = vector.load %arg2[%c0_1, %c0_2] : memref<48x128xf32, #tpu.memory_space<vmem>>, vector<16x128xf32>
    %cst = arith.constant dense<0.000000e+00> : vector<128x128xf32>
    %2 = tpu.matmul %0, %1, %cst {dimension_numbers = #tpu.dot_dimension_numbers<[1], [0], [0], [1], [0, 0, 1, 1], [], []>} : vector<128x16xf32>, vector<16x128xf32>, vector<128x128xf32> -> vector<128x128xf32>
    %c16 = arith.constant 16 : index
    %c0_3 = arith.constant 0 : index
    %3 = vector.load %arg0[%c16, %c0_3] : memref<160x16xf32, #tpu.memory_space<vmem>>, vector<128x16xf32>
    %c16_4 = arith.constant 16 : index
    %c0_5 = arith.constant 0 : index
    %4 = vector.load %arg2[%c16_4, %c0_5] : memref<48x128xf32, #tpu.memory_space<vmem>>, vector<16x128xf32>
    %cst_6 = arith.constant dense<0.000000e+00> : vector<128x128xf32>
    %5 = tpu.matmul %3, %4, %cst_6 {dimension_numbers = #tpu.dot_dimension_numbers<[1], [0], [0], [1], [0, 0, 1, 1], [], []>} : vector<128x16xf32>, vector<16x128xf32>, vector<128x128xf32> -> vector<128x128xf32>
    %6 = arith.addf %2, %5 : vector<128x128xf32>
    %c32 = arith.constant 32 : index
    %c0_7 = arith.constant 0 : index
    %7 = vector.load %arg0[%c32, %c0_7] : memref<160x16xf32, #tpu.memory_space<vmem>>, vector<128x16xf32>
    %c32_8 = arith.constant 32 : index
    %c0_9 = arith.constant 0 : index
    %8 = vector.load %arg2[%c32_8, %c0_9] : memref<48x128xf32, #tpu.memory_space<vmem>>, vector<16x128xf32>
    %cst_10 = arith.constant dense<0.000000e+00> : vector<128x128xf32>
    %9 = tpu.matmul %7, %8, %cst_10 {dimension_numbers = #tpu.dot_dimension_numbers<[1], [0], [0], [1], [0, 0, 1, 1], [], []>} : vector<128x16xf32>, vector<16x128xf32>, vector<128x128xf32> -> vector<128x128xf32>
    %10 = arith.addf %6, %9 : vector<128x128xf32>
    %c0_11 = arith.constant 0 : index
    %c0_12 = arith.constant 0 : index
    %11 = vector.load %arg3[%c0_11, %c0_12] : memref<1x128xf32, #tpu.memory_space<vmem>>, vector<1x128xf32>
    %12 = vector.broadcast %11 : vector<1x128xf32> to vector<128x128xf32>
    %13 = arith.addf %10, %12 : vector<128x128xf32>
    %cst_13 = arith.constant 0.000000e+00 : f32
    %14 = vector.broadcast %cst_13 : f32 to vector<128x128xf32>
    %15 = arith.maximumf %13, %14 : vector<128x128xf32>
    %16 = vector.extract_strided_slice %15 {offsets = [0, 0], sizes = [16, 128], strides = [1, 1]} : vector<128x128xf32> to vector<16x128xf32>
    %17 = vector.extract_strided_slice %15 {offsets = [16, 0], sizes = [16, 128], strides = [1, 1]} : vector<128x128xf32> to vector<16x128xf32>
    %18 = arith.maximumf %16, %17 : vector<16x128xf32>
    %19 = vector.extract_strided_slice %15 {offsets = [32, 0], sizes = [16, 128], strides = [1, 1]} : vector<128x128xf32> to vector<16x128xf32>
    %20 = arith.maximumf %18, %19 : vector<16x128xf32>
    %21 = vector.extract_strided_slice %15 {offsets = [48, 0], sizes = [16, 128], strides = [1, 1]} : vector<128x128xf32> to vector<16x128xf32>
    %22 = arith.maximumf %20, %21 : vector<16x128xf32>
    %23 = vector.extract_strided_slice %15 {offsets = [64, 0], sizes = [16, 128], strides = [1, 1]} : vector<128x128xf32> to vector<16x128xf32>
    %24 = arith.maximumf %22, %23 : vector<16x128xf32>
    %25 = vector.extract_strided_slice %15 {offsets = [80, 0], sizes = [16, 128], strides = [1, 1]} : vector<128x128xf32> to vector<16x128xf32>
    %26 = arith.maximumf %24, %25 : vector<16x128xf32>
    %27 = vector.extract_strided_slice %15 {offsets = [96, 0], sizes = [16, 128], strides = [1, 1]} : vector<128x128xf32> to vector<16x128xf32>
    %28 = arith.maximumf %26, %27 : vector<16x128xf32>
    %29 = vector.extract_strided_slice %15 {offsets = [112, 0], sizes = [16, 128], strides = [1, 1]} : vector<128x128xf32> to vector<16x128xf32>
    %30 = arith.maximumf %28, %29 : vector<16x128xf32>
    %c0_14 = arith.constant 0 : index
    %c0_15 = arith.constant 0 : index
    %31 = vector.load %arg1[%c0_14, %c0_15] : memref<2x160xf32, #tpu.memory_space<vmem>>, vector<2x160xf32>
    %c0_16 = arith.constant 0 : index
    %c0_17 = arith.constant 0 : index
    %32 = vector.load %arg4[%c0_16, %c0_17] : memref<160x128xf32, #tpu.memory_space<vmem>>, vector<160x128xf32>
    %cst_18 = arith.constant dense<0.000000e+00> : vector<2x128xf32>
    %33 = tpu.matmul %31, %32, %cst_18 {dimension_numbers = #tpu.dot_dimension_numbers<[1], [0], [0], [1], [0, 0, 1, 1], [], []>} : vector<2x160xf32>, vector<160x128xf32>, vector<2x128xf32> -> vector<2x128xf32>
    %c0_19 = arith.constant 0 : index
    %c0_20 = arith.constant 0 : index
    %34 = vector.load %arg6[%c0_19, %c0_20] : memref<1x128xf32, #tpu.memory_space<vmem>>, vector<1x128xf32>
    %35 = vector.broadcast %34 : vector<1x128xf32> to vector<2x128xf32>
    %36 = arith.addf %33, %35 : vector<2x128xf32>
    %37 = vector.extract_strided_slice %30 {offsets = [0, 0], sizes = [2, 128], strides = [1, 1]} : vector<16x128xf32> to vector<2x128xf32>
    %c0_21 = arith.constant 0 : index
    %c0_22 = arith.constant 0 : index
    %38 = vector.load %arg5[%c0_21, %c0_22] : memref<640x128xf32, #tpu.memory_space<vmem>>, vector<128x128xf32>
    %cst_23 = arith.constant dense<0.000000e+00> : vector<2x128xf32>
    %39 = tpu.matmul %37, %38, %cst_23 {dimension_numbers = #tpu.dot_dimension_numbers<[1], [0], [0], [1], [0, 0, 1, 1], [], []>} : vector<2x128xf32>, vector<128x128xf32>, vector<2x128xf32> -> vector<2x128xf32>
    %40 = arith.addf %36, %39 : vector<2x128xf32>
    %41 = vector.extract_strided_slice %30 {offsets = [2, 0], sizes = [2, 128], strides = [1, 1]} : vector<16x128xf32> to vector<2x128xf32>
    %c128 = arith.constant 128 : index
    %c0_24 = arith.constant 0 : index
    %42 = vector.load %arg5[%c128, %c0_24] : memref<640x128xf32, #tpu.memory_space<vmem>>, vector<128x128xf32>
    %cst_25 = arith.constant dense<0.000000e+00> : vector<2x128xf32>
    %43 = tpu.matmul %41, %42, %cst_25 {dimension_numbers = #tpu.dot_dimension_numbers<[1], [0], [0], [1], [0, 0, 1, 1], [], []>} : vector<2x128xf32>, vector<128x128xf32>, vector<2x128xf32> -> vector<2x128xf32>
    %44 = arith.addf %40, %43 : vector<2x128xf32>
    %45 = vector.extract_strided_slice %30 {offsets = [4, 0], sizes = [2, 128], strides = [1, 1]} : vector<16x128xf32> to vector<2x128xf32>
    %c256 = arith.constant 256 : index
    %c0_26 = arith.constant 0 : index
    %46 = vector.load %arg5[%c256, %c0_26] : memref<640x128xf32, #tpu.memory_space<vmem>>, vector<128x128xf32>
    %cst_27 = arith.constant dense<0.000000e+00> : vector<2x128xf32>
    %47 = tpu.matmul %45, %46, %cst_27 {dimension_numbers = #tpu.dot_dimension_numbers<[1], [0], [0], [1], [0, 0, 1, 1], [], []>} : vector<2x128xf32>, vector<128x128xf32>, vector<2x128xf32> -> vector<2x128xf32>
    %48 = arith.addf %44, %47 : vector<2x128xf32>
    %49 = vector.extract_strided_slice %30 {offsets = [6, 0], sizes = [2, 128], strides = [1, 1]} : vector<16x128xf32> to vector<2x128xf32>
    %c384 = arith.constant 384 : index
    %c0_28 = arith.constant 0 : index
    %50 = vector.load %arg5[%c384, %c0_28] : memref<640x128xf32, #tpu.memory_space<vmem>>, vector<128x128xf32>
    %cst_29 = arith.constant dense<0.000000e+00> : vector<2x128xf32>
    %51 = tpu.matmul %49, %50, %cst_29 {dimension_numbers = #tpu.dot_dimension_numbers<[1], [0], [0], [1], [0, 0, 1, 1], [], []>} : vector<2x128xf32>, vector<128x128xf32>, vector<2x128xf32> -> vector<2x128xf32>
    %52 = arith.addf %48, %51 : vector<2x128xf32>
    %53 = vector.extract_strided_slice %30 {offsets = [8, 0], sizes = [2, 128], strides = [1, 1]} : vector<16x128xf32> to vector<2x128xf32>
    %c512 = arith.constant 512 : index
    %c0_30 = arith.constant 0 : index
    %54 = vector.load %arg5[%c512, %c0_30] : memref<640x128xf32, #tpu.memory_space<vmem>>, vector<128x128xf32>
    %cst_31 = arith.constant dense<0.000000e+00> : vector<2x128xf32>
    %55 = tpu.matmul %53, %54, %cst_31 {dimension_numbers = #tpu.dot_dimension_numbers<[1], [0], [0], [1], [0, 0, 1, 1], [], []>} : vector<2x128xf32>, vector<128x128xf32>, vector<2x128xf32> -> vector<2x128xf32>
    %56 = arith.addf %52, %55 : vector<2x128xf32>
    %57 = math.tanh %56 : vector<2x128xf32>
    %c0_32 = arith.constant 0 : index
    %c0_33 = arith.constant 0 : index
    %58 = vector.load %arg7[%c0_32, %c0_33] : memref<128x128xf32, #tpu.memory_space<vmem>>, vector<128x128xf32>
    %cst_34 = arith.constant dense<0.000000e+00> : vector<2x128xf32>
    %59 = tpu.matmul %57, %58, %cst_34 {dimension_numbers = #tpu.dot_dimension_numbers<[1], [0], [0], [1], [0, 0, 1, 1], [], []>} : vector<2x128xf32>, vector<128x128xf32>, vector<2x128xf32> -> vector<2x128xf32>
    %c0_35 = arith.constant 0 : index
    %c0_36 = arith.constant 0 : index
    %60 = vector.load %arg8[%c0_35, %c0_36] : memref<1x128xf32, #tpu.memory_space<vmem>>, vector<1x128xf32>
    %61 = vector.broadcast %60 : vector<1x128xf32> to vector<2x128xf32>
    %62 = arith.addf %59, %61 : vector<2x128xf32>
    %c0_37 = arith.constant 0 : index
    %c0_38 = arith.constant 0 : index
    %63 = vector.load %arg9[%c0_37, %c0_38] : memref<2x128xf32, #tpu.memory_space<vmem>>, vector<2x128xf32>
    tpu.vector_store %arg9[%c0_37, %c0_38], %62 {strides = array<i32>} : memref<2x128xf32, #tpu.memory_space<vmem>>, vector<2x128xf32>,
    return
  }
}

</mosaic_0001>

<llo_original>
// kernel: tagger_forward.1
$region0: #{tagger_forward.1}
  #allocation0 [shape = 'u32[]', space=smem, size = 0x4, offset = 0x4, fixed_abs, tag = 'smem constant byte address 0x4 - core index']
  #allocation1 [shape = 'u32[144,128]{1,0:T(1,128)}', space=vmem, size = 0x12000, scoped, tag = 'internal scratch']
  %s0 = inlined_call_operand.vmem [shape: f32[160,16], index: 0, kind: input, shape index: {}]
  %s1 = inlined_call_operand.vmem [shape: f32[2,160], index: 1, kind: input, shape index: {}]
  %s2 = inlined_call_operand.vmem [shape: f32[48,128], index: 2, kind: input, shape index: {}]
  %s3 = inlined_call_operand.vmem [shape: f32[1,128], index: 3, kind: input, shape index: {}]
  %s4 = inlined_call_operand.vmem [shape: f32[160,128], index: 4, kind: input, shape index: {}]
  %s5 = inlined_call_operand.vmem [shape: f32[640,128], index: 5, kind: input, shape index: {}]
  %s6 = inlined_call_operand.vmem [shape: f32[1,128], index: 6, kind: input, shape index: {}]
  %s7 = inlined_call_operand.vmem [shape: f32[128,128], index: 7, kind: input, shape index: {}]
  %s8 = inlined_call_operand.vmem [shape: f32[1,128], index: 8, kind: input, shape index: {}]
  %s9 = inlined_call_operand.hbm [shape: f32[2,128], index: 9, kind: output, shape index: {}]
  %s10 = sld [smem:[#allocation0]]
  $region46: #{tagger_forward.1} parent=0
    _
  %s12 = ssub.s32 1, %s10
  %s13 = scalar_select 0, %s12, %s10
  $region1: #{tagger_forward.1} parent=0
    #allocation2 [shape = 'u8[1024]{0}', space=vmem, size = 0x400, scoped, tag = 'output window, operand 0, single buffered']
    #allocation3 [shape = 's32[1]{0}', space=sflag, size = 0x4, scoped, tag = 'scoped memory for tagger_forward.1']
    %14 = vsyncpa [#allocation3], 0
    // Predicated region
    $region2: #{tagger_forward.1} parent=1 // pred_check
      _
    $region3: #{tagger_forward.1} parent=1 // pred_check_branch
      %16 = sbr.rel (0) target = $region5
    $region4: #{tagger_forward.1} parent=1 // pred_region
      _
    $region5: #{tagger_forward.1} parent=1 // pred_fallthru
      _
    // Predicated region
    $region6: #{tagger_forward.1} parent=1 // pred_check
      _
    $region7: #{tagger_forward.1} parent=1 // pred_check_branch
      %18 = sbr.rel (0) target = $region9
    $region8: #{tagger_forward.1} parent=1 // pred_region
      _
    $region9: #{tagger_forward.1} parent=1 // pred_fallthru
      _
    // Predicated region
    $region10: #{tagger_forward.1} parent=1 // pred_check
      _
    $region11: #{tagger_forward.1} parent=1 // pred_check_branch
      %20 = sbr.rel (0) target = $region13
    $region12: #{tagger_forward.1} parent=1 // pred_region
      _
    $region13: #{tagger_forward.1} parent=1 // pred_fallthru
      _
    // Predicated region
    $region14: #{tagger_forward.1} parent=1 // pred_check
      _
    $region15: #{tagger_forward.1} parent=1 // pred_check_branch
      %22 = sbr.rel (0) target = $region17
    $region16: #{tagger_forward.1} parent=1 // pred_region
      _
    $region17: #{tagger_forward.1} parent=1 // pred_fallthru
      _
    // Predicated region
    $region18: #{tagger_forward.1} parent=1 // pred_check
      _
    $region19: #{tagger_forward.1} parent=1 // pred_check_branch
      %24 = sbr.rel (0) target = $region21
    $region20: #{tagger_forward.1} parent=1 // pred_region
      _
    $region21: #{tagger_forward.1} parent=1 // pred_fallthru
      _
    // Predicated region
    $region22: #{tagger_forward.1} parent=1 // pred_check
      _
    $region23: #{tagger_forward.1} parent=1 // pred_check_branch
      %26 = sbr.rel (0) target = $region25
    $region24: #{tagger_forward.1} parent=1 // pred_region
      _
    $region25: #{tagger_forward.1} parent=1 // pred_fallthru
      _
    // Predicated region
    $region26: #{tagger_forward.1} parent=1 // pred_check
      _
    $region27: #{tagger_forward.1} parent=1 // pred_check_branch
      %28 = sbr.rel (0) target = $region29
    $region28: #{tagger_forward.1} parent=1 // pred_region
      _
    $region29: #{tagger_forward.1} parent=1 // pred_fallthru
      _
    // Predicated region
    $region30: #{tagger_forward.1} parent=1 // pred_check
      _
    $region31: #{tagger_forward.1} parent=1 // pred_check_branch
      %30 = sbr.rel (0) target = $region33
    $region32: #{tagger_forward.1} parent=1 // pred_region
      _
    $region33: #{tagger_forward.1} parent=1 // pred_fallthru
      _
    // Predicated region
    $region34: #{tagger_forward.1} parent=1 // pred_check
      _
    $region35: #{tagger_forward.1} parent=1 // pred_check_branch
      %32 = sbr.rel (0) target = $region37
    $region36: #{tagger_forward.1} parent=1 // pred_region
      _
    $region37: #{tagger_forward.1} parent=1 // pred_fallthru
      _
    %v33 = vld [vmem:[%s0] sm:$0xff]
    %v34 = vld [vmem:[%s0 + $0x8] sm:$0xff]
    %v35 = vld [vmem:[%s0 + $0x10] sm:$0xff]
    %v36 = vld [vmem:[%s0 + $0x18] sm:$0xff]
    %v37 = vld [vmem:[%s0 + $0x20] sm:$0xff]
    %v38 = vld [vmem:[%s0 + $0x28] sm:$0xff]
    %v39 = vld [vmem:[%s0 + $0x30] sm:$0xff]
    %v40 = vld [vmem:[%s0 + $0x38] sm:$0xff]
    %v41 = vld [vmem:[%s0 + $0x40] sm:$0xff]
    %v42 = vld [vmem:[%s0 + $0x48] sm:$0xff]
    %v43 = vld [vmem:[%s0 + $0x50] sm:$0xff]
    %v44 = vld [vmem:[%s0 + $0x58] sm:$0xff]
    %v45 = vld [vmem:[%s0 + $0x60] sm:$0xff]
    %v46 = vld [vmem:[%s0 + $0x68] sm:$0xff]
    %v47 = vld [vmem:[%s0 + $0x70] sm:$0xff]
    %v48 = vld [vmem:[%s0 + $0x78] sm:$0xff]
    %v49 = vld [vmem:[%s2] sm:$0xff]
    %v50 = vld [vmem:[%s2 + $0x8] sm:$0xff]
    %v51 = vld [vmem:[%s0 + $0x80] sm:$0xff]
    %v52 = vld [vmem:[%s0 + $0x88] sm:$0xff]
    %v53 = vld [vmem:[%s2 + $0x10] sm:$0xff]
    %v54 = vld [vmem:[%s2 + $0x18] sm:$0xff]
    %vm55 = vcmask 130048
    %v57 = vsel %vm55, %v35, 0
    %v60 = vsel %vm55, %v36, 0
    %v63 = vsel %vm55, %v37, 0
    %v66 = vsel %vm55, %v38, 0
    %v69 = vsel %vm55, %v39, 0
    %v72 = vsel %vm55, %v40, 0
    %v75 = vsel %vm55, %v41, 0
    %v78 = vsel %vm55, %v42, 0
    %v81 = vsel %vm55, %v43, 0
    %v84 = vsel %vm55, %v44, 0
    %v87 = vsel %vm55, %v45, 0
    %v90 = vsel %vm55, %v46, 0
    %v93 = vsel %vm55, %v47, 0
    %v96 = vsel %vm55, %v48, 0
    %v99 = vsel %vm55, %v51, 0
    %v102 = vsel %vm55, %v52, 0
    %104 = vmatprep.subr.mxu0 0.0
    %105 = vmatpush1.msra.mxu0 %v53
    %106 = vmatprep.subr.mxu0 0.0
    %107 = vmatpush1.msra.mxu0 %v54
    %108 = vmatprep.subr.mxu0 0.0
    %109 = vmatpush1.msra.mxu0 0.0
    %110 = vmatprep.subr.mxu0 0.0
    %111 = vmatpush1.msra.mxu0 0.0
    %112 = vmatprep.subr.mxu0 0.0
    %113 = vmatpush1.msra.mxu0 0.0
    %114 = vmatprep.subr.mxu0 0.0
    %115 = vmatpush1.msra.mxu0 0.0
    %116 = vmatprep.subr.mxu0 0.0
    %117 = vmatpush1.msra.mxu0 0.0
    %118 = vmatprep.subr.mxu0 0.0
    %119 = vmatpush1.msra.mxu0 0.0
    %120 = vmatprep.subr.mxu0 0.0
    %121 = vmatpush1.msra.mxu0 0.0
    %122 = vmatprep.subr.mxu0 0.0
    %123 = vmatpush1.msra.mxu0 0.0
    %124 = vmatprep.subr.mxu0 0.0
    %125 = vmatpush1.msra.mxu0 0.0
    %126 = vmatprep.subr.mxu0 0.0
    %127 = vmatpush1.msra.mxu0 0.0
    %128 = vmatprep.subr.mxu0 0.0
    %129 = vmatpush1.msra.mxu0 0.0
    %130 = vmatprep.subr.mxu0 0.0
    %131 = vmatpush1.msra.mxu0 0.0
    %132 = vmatprep.subr.mxu0 0.0
    %133 = vmatpush1.msra.mxu0 0.0
    %134 = vmatprep.subr.mxu0 0.0
    %135 = vmatpush1.msra.mxu0 0.0
    %136 = vmatprep.subr.mxu0 0.0
    %137 = vmatpush1.msra.mxu0 0.0
    %138 = vmatprep.subr.mxu0 0.0
    %139 = vmatpush1.msra.mxu0 0.0
    %140 = vmatprep.subr.mxu0 0.0
    %141 = vmatpush1.msra.mxu0 0.0
    %142 = vmatprep.subr.mxu0 0.0
    %143 = vmatpush1.msra.mxu0 0.0
    %144 = vmatprep.subr.mxu0 0.0
    %145 = vmatpush1.msra.mxu0 0.0
    %146 = vmatprep.subr.mxu0 0.0
    %147 = vmatpush1.msra.mxu0 0.0
    %148 = vmatprep.subr.mxu0 0.0
    %149 = vmatpush1.msra.mxu0 0.0
    %150 = vmatprep.subr.mxu0 0.0
    %151 = vmatpush1.msra.mxu0 0.0
    %152 = vmatprep.subr.mxu0 0.0
    %153 = vmatpush1.msra.mxu0 0.0
    %154 = vmatprep.subr.mxu0 0.0
    %155 = vmatpush1.msra.mxu0 0.0
    %156 = vmatprep.subr.mxu0 0.0
    %157 = vmatpush1.msra.mxu0 0.0
    %158 = vmatprep.subr.mxu0 0.0
    %159 = vmatpush1.msra.mxu0 0.0
    %160 = vmatprep.subr.mxu0 0.0
    %161 = vmatpush1.msra.mxu0 0.0
    %162 = vmatprep.subr.mxu0 0.0
    %163 = vmatpush1.msra.mxu0 0.0
    %164 = vmatprep.subr.mxu0 0.0
    %165 = vmatpush1.msra.mxu0 0.0
    %166 = vmatprep.subr.mxu0 0.0
    %167 = vmatpush1.msra.mxu0 0.0
    %168 = vmatprep.mubr.f32.mxu0 0.0
    %169 = vmatmul.mubr.f32.gmra.mrb[0].mxu0 %v57
    %v170 = vpop.f32.mrb[0].mxu0
    %v171 = vadd.f32 0.0, %v170
    %v172 = vpop.f32.mrb[0].mxu0
    %173 = vmatprep.mubr.f32.mxu0 0.0
    %174 = vmatmul.mubr.f32.gmra.mrb[0].mxu0 %v60
    %v175 = vpop.f32.mrb[0].mxu0
    %v176 = vadd.f32 0.0, %v175
    %v177 = vpop.f32.mrb[0].mxu0
    %178 = vmatprep.mubr.f32.mxu0 0.0
    %179 = vmatmul.mubr.f32.gmra.mrb[0].mxu0 %v63
    %v180 = vpop.f32.mrb[0].mxu0
    %v181 = vadd.f32 0.0, %v180
    %v182 = vpop.f32.mrb[0].mxu0
    %183 = vmatprep.mubr.f32.mxu0 0.0
    %184 = vmatmul.mubr.f32.gmra.mrb[0].mxu0 %v66
    %v185 = vpop.f32.mrb[0].mxu0
    %v186 = vadd.f32 0.0, %v185
    %v187 = vpop.f32.mrb[0].mxu0
    %188 = vmatprep.mubr.f32.mxu0 0.0
    %189 = vmatmul.mubr.f32.gmra.mrb[0].mxu0 %v69
    %v190 = vpop.f32.mrb[0].mxu0
    %v191 = vadd.f32 0.0, %v190
    %v192 = vpop.f32.mrb[0].mxu0
    %193 = vmatprep.mubr.f32.mxu0 0.0
    %194 = vmatmul.mubr.f32.gmra.mrb[0].mxu0 %v72
    %v195 = vpop.f32.mrb[0].mxu0
    %v196 = vadd.f32 0.0, %v195
    %v197 = vpop.f32.mrb[0].mxu0
    %198 = vmatprep.mubr.f32.mxu0 0.0
    %199 = vmatmul.mubr.f32.gmra.mrb[0].mxu0 %v75
    %v200 = vpop.f32.mrb[0].mxu0
    %v201 = vadd.f32 0.0, %v200
    %v202 = vpop.f32.mrb[0].mxu0
    %203 = vmatprep.mubr.f32.mxu0 0.0
    %204 = vmatmul.mubr.f32.gmra.mrb[0].mxu0 %v78
    %v205 = vpop.f32.mrb[0].mxu0
    %v206 = vadd.f32 0.0, %v205
    %v207 = vpop.f32.mrb[0].mxu0
    %208 = vmatprep.mubr.f32.mxu0 0.0
    %209 = vmatmul.mubr.f32.gmra.mrb[0].mxu0 %v81
    %v210 = vpop.f32.mrb[0].mxu0
    %v211 = vadd.f32 0.0, %v210
    %v212 = vpop.f32.mrb[0].mxu0
    %213 = vmatprep.mubr.f32.mxu0 0.0
    %214 = vmatmul.mubr.f32.gmra.mrb[0].mxu0 %v84
    %v215 = vpop.f32.mrb[0].mxu0
    %v216 = vadd.f32 0.0, %v215
    %v217 = vpop.f32.mrb[0].mxu0
    %218 = vmatprep.mubr.f32.mxu0 0.0
    %219 = vmatmul.mubr.f32.gmra.mrb[0].mxu0 %v87
    %v220 = vpop.f32.mrb[0].mxu0
    %v221 = vadd.f32 0.0, %v220
    %v222 = vpop.f32.mrb[0].mxu0
    %223 = vmatprep.mubr.f32.mxu0 0.0
    %224 = vmatmul.mubr.f32.gmra.mrb[0].mxu0 %v90
    %v225 = vpop.f32.mrb[0].mxu0
    %v226 = vadd.f32 0.0, %v225
    %v227 = vpop.f32.mrb[0].mxu0
    %228 = vmatprep.mubr.f32.mxu0 0.0
    %229 = vmatmul.mubr.f32.gmra.mrb[0].mxu0 %v93
    %v230 = vpop.f32.mrb[0].mxu0
    %v231 = vadd.f32 0.0, %v230
    %v232 = vpop.f32.mrb[0].mxu0
    %233 = vmatprep.mubr.f32.mxu0 0.0
    %234 = vmatmul.mubr.f32.gmra.mrb[0].mxu0 %v96
    %v235 = vpop.f32.mrb[0].mxu0
    %v236 = vadd.f32 0.0, %v235
    %v237 = vpop.f32.mrb[0].mxu0
    %238 = vmatprep.mubr.f32.mxu0 0.0
    %239 = vmatmul.mubr.f32.gmra.mrb[0].mxu0 %v99
    %v240 = vpop.f32.mrb[0].mxu0
    %v241 = vadd.f32 0.0, %v240
    %v242 = vpop.f32.mrb[0].mxu0
    %243 = vmatprep.mubr.f32.mxu0 0.0
    %244 = vmatmul.mubr.f32.gmra.mrb[0].mxu0 %v102
    %v245 = vpop.f32.mrb[0].mxu0
    %v246 = vadd.f32 0.0, %v245
    %v247 = vpop.f32.mrb[0].mxu0
    %248 = vdwg.mxu0
    %v250 = vsel %vm55, %v33, 0
    %v253 = vsel %vm55, %v34, 0
    %255 = vmatprep.subr.mxu0 0.0
    %256 = vmatpush1.msra.mxu0 %v49
    %257 = vmatprep.subr.mxu0 0.0
    %258 = vmatpush1.msra.mxu0 %v50
    %259 = vmatprep.subr.mxu0 0.0
    %260 = vmatpush1.msra.mxu0 0.0
    %261 = vmatprep.subr.mxu0 0.0
    %262 = vmatpush1.msra.mxu0 0.0
    %263 = vmatprep.subr.mxu0 0.0
    %264 = vmatpush1.msra.mxu0 0.0
    %265 = vmatprep.subr.mxu0 0.0
    %266 = vmatpush1.msra.mxu0 0.0
    %267 = vmatprep.subr.mxu0 0.0
    %268 = vmatpush1.msra.mxu0 0.0
    %269 = vmatprep.subr.mxu0 0.0
    %270 = vmatpush1.msra.mxu0 0.0
    %271 = vmatprep.subr.mxu0 0.0
    %272 = vmatpush1.msra.mxu0 0.0
    %273 = vmatprep.subr.mxu0 0.0
    %274 = vmatpush1.msra.mxu0 0.0
    %275 = vmatprep.subr.mxu0 0.0
    %276 = vmatpush1.msra.mxu0 0.0
    %277 = vmatprep.subr.mxu0 0.0
    %278 = vmatpush1.msra.mxu0 0.0
    %279 = vmatprep.subr.mxu0 0.0
    %280 = vmatpush1.msra.mxu0 0.0
    %281 = vmatprep.subr.mxu0 0.0
    %282 = vmatpush1.msra.mxu0 0.0
    %283 = vmatprep.subr.mxu0 0.0
    %284 = vmatpush1.msra.mxu0 0.0
    %285 = vmatprep.subr.mxu0 0.0
    %286 = vmatpush1.msra.mxu0 0.0
    %287 = vmatprep.subr.mxu0 0.0
    %288 = vmatpush1.msra.mxu0 0.0
    %289 = vmatprep.subr.mxu0 0.0
    %290 = vmatpush1.msra.mxu0 0.0
    %291 = vmatprep.subr.mxu0 0.0
    %292 = vmatpush1.msra.mxu0 0.0
    %293 = vmatprep.subr.mxu0 0.0
    %294 = vmatpush1.msra.mxu0 0.0
    %295 = vmatprep.subr.mxu0 0.0
    %296 = vmatpush1.msra.mxu0 0.0
    %297 = vmatprep.subr.mxu0 0.0
    %298 = vmatpush1.msra.mxu0 0.0
    %299 = vmatprep.subr.mxu0 0.0
    %300 = vmatpush1.msra.mxu0 0.0
    %301 = vmatprep.subr.mxu0 0.0
    %302 = vmatpush1.msra.mxu0 0.0
    %303 = vmatprep.subr.mxu0 0.0
    %304 = vmatpush1.msra.mxu0 0.0
    %305 = vmatprep.subr.mxu0 0.0
    %306 = vmatpush1.msra.mxu0 0.0
    %307 = vmatprep.subr.mxu0 0.0
    %308 = vmatpush1.msra.mxu0 0.0
    %309 = vmatprep.subr.mxu0 0.0
    %310 = vmatpush1.msra.mxu0 0.0
    %311 = vmatprep.subr.mxu0 0.0
    %312 = vmatpush1.msra.mxu0 0.0
    %313 = vmatprep.subr.mxu0 0.0
    %314 = vmatpush1.msra.mxu0 0.0
    %315 = vmatprep.subr.mxu0 0.0
    %316 = vmatpush1.msra.mxu0 0.0
    %317 = vmatprep.subr.mxu0 0.0
    %318 = vmatpush1.msra.mxu0 0.0
    %319 = vmatprep.mubr.f32.mxu0 0.0
    %320 = vmatmul.mubr.f32.gmra.mrb[0].mxu0 %v250
    %v321 = vpop.f32.mrb[0].mxu0
    %v322 = vadd.f32 %v171, %v321
    %v323 = vpop.f32.mrb[0].mxu0
    %324 = vmatprep.mubr.f32.mxu0 0.0
    %325 = vmatmul.mubr.f32.gmra.mrb[0].mxu0 %v253
    %v326 = vpop.f32.mrb[0].mxu0
    %v327 = vadd.f32 %v176, %v326
    %v328 = vpop.f32.mrb[0].mxu0
    %329 = vmatprep.mubr.f32.mxu0 0.0
    %330 = vmatmul.mubr.f32.gmra.mrb[0].mxu0 %v57
    %v331 = vpop.f32.mrb[0].mxu0
    %v332 = vadd.f32 %v181, %v331
    %v333 = vpop.f32.mrb[0].mxu0
    %334 = vmatprep.mubr.f32.mxu0 0.0
    %335 = vmatmul.mubr.f32.gmra.mrb[0].mxu0 %v60
    %v336 = vpop.f32.mrb[0].mxu0
    %v337 = vadd.f32 %v186, %v336
    %v338 = vpop.f32.mrb[0].mxu0
    %339 = vmatprep.mubr.f32.mxu0 0.0
    %340 = vmatmul.mubr.f32.gmra.mrb[0].mxu0 %v63
    %v341 = vpop.f32.mrb[0].mxu0
    %v342 = vadd.f32 %v191, %v341
    %v343 = vpop.f32.mrb[0].mxu0
    %344 = vmatprep.mubr.f32.mxu0 0.0
    %345 = vmatmul.mubr.f32.gmra.mrb[0].mxu0 %v66
    %v346 = vpop.f32.mrb[0].mxu0
    %v347 = vadd.f32 %v196, %v346
    %v348 = vpop.f32.mrb[0].mxu0
    %349 = vmatprep.mubr.f32.mxu0 0.0
    %350 = vmatmul.mubr.f32.gmra.mrb[0].mxu0 %v69
    %v351 = vpop.f32.mrb[0].mxu0
    %v352 = vadd.f32 %v201, %v351
    %v353 = vpop.f32.mrb[0].mxu0
    %354 = vmatprep.mubr.f32.mxu0 0.0
    %355 = vmatmul.mubr.f32.gmra.mrb[0].mxu0 %v72
    %v356 = vpop.f32.mrb[0].mxu0
    %v357 = vadd.f32 %v206, %v356
    %v358 = vpop.f32.mrb[0].mxu0
    %359 = vmatprep.mubr.f32.mxu0 0.0
    %360 = vmatmul.mubr.f32.gmra.mrb[0].mxu0 %v75
    %v361 = vpop.f32.mrb[0].mxu0
    %v362 = vadd.f32 %v211, %v361
    %v363 = vpop.f32.mrb[0].mxu0
    %364 = vmatprep.mubr.f32.mxu0 0.0
    %365 = vmatmul.mubr.f32.gmra.mrb[0].mxu0 %v78
    %v366 = vpop.f32.mrb[0].mxu0
    %v367 = vadd.f32 %v216, %v366
    %v368 = vpop.f32.mrb[0].mxu0
    %369 = vmatprep.mubr.f32.mxu0 0.0
    %370 = vmatmul.mubr.f32.gmra.mrb[0].mxu0 %v81
    %v371 = vpop.f32.mrb[0].mxu0
    %v372 = vadd.f32 %v221, %v371
    %v373 = vpop.f32.mrb[0].mxu0
    %374 = vmatprep.mubr.f32.mxu0 0.0
    %375 = vmatmul.mubr.f32.gmra.mrb[0].mxu0 %v84
    %v376 = vpop.f32.mrb[0].mxu0
    %v377 = vadd.f32 %v226, %v376
    %v378 = vpop.f32.mrb[0].mxu0
    %379 = vmatprep.mubr.f32.mxu0 0.0
    %380 = vmatmul.mubr.f32.gmra.mrb[0].mxu0 %v87
    %v381 = vpop.f32.mrb[0].mxu0
    %v382 = vadd.f32 %v231, %v381
    %v383 = vpop.f32.mrb[0].mxu0
    %384 = vmatprep.mubr.f32.mxu0 0.0
    %385 = vmatmul.mubr.f32.gmra.mrb[0].mxu0 %v90
    %v386 = vpop.f32.mrb[0].mxu0
    %v387 = vadd.f32 %v236, %v386
    %v388 = vpop.f32.mrb[0].mxu0
    %389 = vmatprep.mubr.f32.mxu0 0.0
    %390 = vmatmul.mubr.f32.gmra.mrb[0].mxu0 %v93
    %v391 = vpop.f32.mrb[0].mxu0
    %v392 = vadd.f32 %v241, %v391
    %v393 = vpop.f32.mrb[0].mxu0
    %394 = vmatprep.mubr.f32.mxu0 0.0
    %395 = vmatmul.mubr.f32.gmra.mrb[0].mxu0 %v96
    %v396 = vpop.f32.mrb[0].mxu0
    %v397 = vadd.f32 %v246, %v396
    %v398 = vpop.f32.mrb[0].mxu0
    %399 = vdwg.mxu0
    %v400 = vld [vmem:[%s0 + $0x20] sm:$0xff]
    %v401 = vld [vmem:[%s0 + $0x28] sm:$0xff]
    %v402 = vld [vmem:[%s0 + $0x30] sm:$0xff]
    %v403 = vld [vmem:[%s0 + $0x38] sm:$0xff]
    %v404 = vld [vmem:[%s0 + $0x40] sm:$0xff]
    %v405 = vld [vmem:[%s0 + $0x48] sm:$0xff]
    %v406 = vld [vmem:[%s0 + $0x50] sm:$0xff]
    %v407 = vld [vmem:[%s0 + $0x58] sm:$0xff]
    %v408 = vld [vmem:[%s0 + $0x60] sm:$0xff]
    %v409 = vld [vmem:[%s0 + $0x68] sm:$0xff]
    %v410 = vld [vmem:[%s0 + $0x70] sm:$0xff]
    %v411 = vld [vmem:[%s0 + $0x78] sm:$0xff]
    %v412 = vld [vmem:[%s0 + $0x80] sm:$0xff]
    %v413 = vld [vmem:[%s0 + $0x88] sm:$0xff]
    %v414 = vld [vmem:[%s0 + $0x90] sm:$0xff]
    %v415 = vld [vmem:[%s0 + $0x98] sm:$0xff]
    %v416 = vld [vmem:[%s2 + $0x20] sm:$0xff]
    %v417 = vld [vmem:[%s2 + $0x28] sm:$0xff]
    %v419 = vsel %vm55, %v400, 0
    %v422 = vsel %vm55, %v401, 0
    %v425 = vsel %vm55, %v402, 0
    %v428 = vsel %vm55, %v403, 0
    %v431 = vsel %vm55, %v404, 0
    %v434 = vsel %vm55, %v405, 0
    %v437 = vsel %vm55, %v406, 0
    %v440 = vsel %vm55, %v407, 0
    %v443 = vsel %vm55, %v408, 0
    %v446 = vsel %vm55, %v409, 0
    %v449 = vsel %vm55, %v410, 0
    %v452 = vsel %vm55, %v411, 0
    %v455 = vsel %vm55, %v412, 0
    %v458 = vsel %vm55, %v413, 0
    %v461 = vsel %vm55, %v414, 0
    %v464 = vsel %vm55, %v415, 0
    %466 = vmatprep.subr.mxu0 0.0
    %467 = vmatpush1.msra.mxu0 %v416
    %468 = vmatprep.subr.mxu0 0.0
    %469 = vmatpush1.msra.mxu0 %v417
    %470 = vmatprep.subr.mxu0 0.0
    %471 = vmatpush1.msra.mxu0 0.0
    %472 = vmatprep.subr.mxu0 0.0
    %473 = vmatpush1.msra.mxu0 0.0
    %474 = vmatprep.subr.mxu0 0.0
    %475 = vmatpush1.msra.mxu0 0.0
    %476 = vmatprep.subr.mxu0 0.0
    %477 = vmatpush1.msra.mxu0 0.0
    %478 = vmatprep.subr.mxu0 0.0
    %479 = vmatpush1.msra.mxu0 0.0
    %480 = vmatprep.subr.mxu0 0.0
    %481 = vmatpush1.msra.mxu0 0.0
    %482 = vmatprep.subr.mxu0 0.0
    %483 = vmatpush1.msra.mxu0 0.0
    %484 = vmatprep.subr.mxu0 0.0
    %485 = vmatpush1.msra.mxu0 0.0
    %486 = vmatprep.subr.mxu0 0.0
    %487 = vmatpush1.msra.mxu0 0.0
    %488 = vmatprep.subr.mxu0 0.0
    %489 = vmatpush1.msra.mxu0 0.0
    %490 = vmatprep.subr.mxu0 0.0
    %491 = vmatpush1.msra.mxu0 0.0
    %492 = vmatprep.subr.mxu0 0.0
    %493 = vmatpush1.msra.mxu0 0.0
    %494 = vmatprep.subr.mxu0 0.0
    %495 = vmatpush1.msra.mxu0 0.0
    %496 = vmatprep.subr.mxu0 0.0
    %497 = vmatpush1.msra.mxu0 0.0
    %498 = vmatprep.subr.mxu0 0.0
    %499 = vmatpush1.msra.mxu0 0.0
    %500 = vmatprep.subr.mxu0 0.0
    %501 = vmatpush1.msra.mxu0 0.0
    %502 = vmatprep.subr.mxu0 0.0
    %503 = vmatpush1.msra.mxu0 0.0
    %504 = vmatprep.subr.mxu0 0.0
    %505 = vmatpush1.msra.mxu0 0.0
    %506 = vmatprep.subr.mxu0 0.0
    %507 = vmatpush1.msra.mxu0 0.0
    %508 = vmatprep.subr.mxu0 0.0
    %509 = vmatpush1.msra.mxu0 0.0
    %510 = vmatprep.subr.mxu0 0.0
    %511 = vmatpush1.msra.mxu0 0.0
    %512 = vmatprep.subr.mxu0 0.0
    %513 = vmatpush1.msra.mxu0 0.0
    %514 = vmatprep.subr.mxu0 0.0
    %515 = vmatpush1.msra.mxu0 0.0
    %516 = vmatprep.subr.mxu0 0.0
    %517 = vmatpush1.msra.mxu0 0.0
    %518 = vmatprep.subr.mxu0 0.0
    %519 = vmatpush1.msra.mxu0 0.0
    %520 = vmatprep.subr.mxu0 0.0
    %521 = vmatpush1.msra.mxu0 0.0
    %522 = vmatprep.subr.mxu0 0.0
    %523 = vmatpush1.msra.mxu0 0.0
    %524 = vmatprep.subr.mxu0 0.0
    %525 = vmatpush1.msra.mxu0 0.0
    %526 = vmatprep.subr.mxu0 0.0
    %527 = vmatpush1.msra.mxu0 0.0
    %528 = vmatprep.subr.mxu0 0.0
    %529 = vmatpush1.msra.mxu0 0.0
    %530 = vmatprep.mubr.f32.mxu0 0.0
    %531 = vmatmul.mubr.f32.gmra.mrb[0].mxu0 %v419
    %v532 = vpop.f32.mrb[0].mxu0
    %v533 = vadd.f32 0.0, %v532
    %v534 = vpop.f32.mrb[0].mxu0
    %535 = vmatprep.mubr.f32.mxu0 0.0
    %536 = vmatmul.mubr.f32.gmra.mrb[0].mxu0 %v422
    %v537 = vpop.f32.mrb[0].mxu0
    %v538 = vadd.f32 0.0, %v537
    %v539 = vpop.f32.mrb[0].mxu0
    %540 = vmatprep.mubr.f32.mxu0 0.0
    %541 = vmatmul.mubr.f32.gmra.mrb[0].mxu0 %v425
    %v542 = vpop.f32.mrb[0].mxu0
    %v543 = vadd.f32 0.0, %v542
    %v544 = vpop.f32.mrb[0].mxu0
    %545 = vmatprep.mubr.f32.mxu0 0.0
    %546 = vmatmul.mubr.f32.gmra.mrb[0].mxu0 %v428
    %v547 = vpop.f32.mrb[0].mxu0
    %v548 = vadd.f32 0.0, %v547
    %v549 = vpop.f32.mrb[0].mxu0
    %550 = vmatprep.mubr.f32.mxu0 0.0
    %551 = vmatmul.mubr.f32.gmra.mrb[0].mxu0 %v431
    %v552 = vpop.f32.mrb[0].mxu0
    %v553 = vadd.f32 0.0, %v552
    %v554 = vpop.f32.mrb[0].mxu0
    %555 = vmatprep.mubr.f32.mxu0 0.0
    %556 = vmatmul.mubr.f32.gmra.mrb[0].mxu0 %v434
    %v557 = vpop.f32.mrb[0].mxu0
    %v558 = vadd.f32 0.0, %v557
    %v559 = vpop.f32.mrb[0].mxu0
    %560 = vmatprep.mubr.f32.mxu0 0.0
    %561 = vmatmul.mubr.f32.gmra.mrb[0].mxu0 %v437
    %v562 = vpop.f32.mrb[0].mxu0
    %v563 = vadd.f32 0.0, %v562
    %v564 = vpop.f32.mrb[0].mxu0
    %565 = vmatprep.mubr.f32.mxu0 0.0
    %566 = vmatmul.mubr.f32.gmra.mrb[0].mxu0 %v440
    %v567 = vpop.f32.mrb[0].mxu0
    %v568 = vadd.f32 0.0, %v567
    %v569 = vpop.f32.mrb[0].mxu0
    %570 = vmatprep.mubr.f32.mxu0 0.0
    %571 = vmatmul.mubr.f32.gmra.mrb[0].mxu0 %v443
    %v572 = vpop.f32.mrb[0].mxu0
    %v573 = vadd.f32 0.0, %v572
    %v574 = vpop.f32.mrb[0].mxu0
    %575 = vmatprep.mubr.f32.mxu0 0.0
    %576 = vmatmul.mubr.f32.gmra.mrb[0].mxu0 %v446
    %v577 = vpop.f32.mrb[0].mxu0
    %v578 = vadd.f32 0.0, %v577
    %v579 = vpop.f32.mrb[0].mxu0
    %580 = vmatprep.mubr.f32.mxu0 0.0
    %581 = vmatmul.mubr.f32.gmra.mrb[0].mxu0 %v449
    %v582 = vpop.f32.mrb[0].mxu0
    %v583 = vadd.f32 0.0, %v582
    %v584 = vpop.f32.mrb[0].mxu0
    %585 = vmatprep.mubr.f32.mxu0 0.0
    %586 = vmatmul.mubr.f32.gmra.mrb[0].mxu0 %v452
    %v587 = vpop.f32.mrb[0].mxu0
    %v588 = vadd.f32 0.0, %v587
    %v589 = vpop.f32.mrb[0].mxu0
    %590 = vmatprep.mubr.f32.mxu0 0.0
    %591 = vmatmul.mubr.f32.gmra.mrb[0].mxu0 %v455
    %v592 = vpop.f32.mrb[0].mxu0
    %v593 = vadd.f32 0.0, %v592
    %v594 = vpop.f32.mrb[0].mxu0
    %595 = vmatprep.mubr.f32.mxu0 0.0
    %596 = vmatmul.mubr.f32.gmra.mrb[0].mxu0 %v458
    %v597 = vpop.f32.mrb[0].mxu0
    %v598 = vadd.f32 0.0, %v597
    %v599 = vpop.f32.mrb[0].mxu0
    %600 = vmatprep.mubr.f32.mxu0 0.0
    %601 = vmatmul.mubr.f32.gmra.mrb[0].mxu0 %v461
    %v602 = vpop.f32.mrb[0].mxu0
    %v603 = vadd.f32 0.0, %v602
    %v604 = vpop.f32.mrb[0].mxu0
    %605 = vmatprep.mubr.f32.mxu0 0.0
    %606 = vmatmul.mubr.f32.gmra.mrb[0].mxu0 %v464
    %v607 = vpop.f32.mrb[0].mxu0
    %v608 = vadd.f32 0.0, %v607
    %v609 = vpop.f32.mrb[0].mxu0
    %610 = vdwg.mxu0
    %v611 = vadd.f32 %v322, %v533
    %v612 = vadd.f32 %v327, %v538
    %v613 = vadd.f32 %v332, %v543
    %v614 = vadd.f32 %v337, %v548
    %v615 = vadd.f32 %v342, %v553
    %v616 = vadd.f32 %v347, %v558
    %v617 = vadd.f32 %v352, %v563
    %v618 = vadd.f32 %v357, %v568
    %v619 = vadd.f32 %v362, %v573
    %v620 = vadd.f32 %v367, %v578
    %v621 = vadd.f32 %v372, %v583
    %v622 = vadd.f32 %v377, %v588
    %v623 = vadd.f32 %v382, %v593
    %v624 = vadd.f32 %v387, %v598
    %v625 = vadd.f32 %v392, %v603
    %v626 = vadd.f32 %v397, %v608
    %v627 = vld [vmem:[%s3] sm:$0x1]
    %v629 = vlaneseq
    %v630 = vshrl.u32 %v629, 7
    %v631 = vsub.s32 0, %v630
    %v632 = vrot.slane %v627, %v631
    %v634 = vadd.f32 %v611, %v632
    %v635 = vadd.f32 %v612, %v632
    %v636 = vadd.f32 %v613, %v632
    %v637 = vadd.f32 %v614, %v632
    %v638 = vadd.f32 %v615, %v632
    %v639 = vadd.f32 %v616, %v632
    %v640 = vadd.f32 %v617, %v632
    %v641 = vadd.f32 %v618, %v632
    %v642 = vadd.f32 %v619, %v632
    %v643 = vadd.f32 %v620, %v632
    %v644 = vadd.f32 %v621, %v632
    %v645 = vadd.f32 %v622, %v632
    %v646 = vadd.f32 %v623, %v632
    %v647 = vadd.f32 %v624, %v632
    %v648 = vadd.f32 %v625, %v632
    %v649 = vadd.f32 %v626, %v632
    %v650 = vmax.f32 %v634, 0.0
    %v651 = vmax.f32 %v635, 0.0
    %v652 = vmax.f32 %v636, 0.0
    %v653 = vmax.f32 %v637, 0.0
    %v654 = vmax.f32 %v638, 0.0
    %v655 = vmax.f32 %v639, 0.0
    %v656 = vmax.f32 %v640, 0.0
    %v657 = vmax.f32 %v641, 0.0
    %v658 = vmax.f32 %v642, 0.0
    %v659 = vmax.f32 %v643, 0.0
    %v660 = vmax.f32 %v644, 0.0
    %v661 = vmax.f32 %v645, 0.0
    %v662 = vmax.f32 %v646, 0.0
    %v663 = vmax.f32 %v647, 0.0
    %v664 = vmax.f32 %v648, 0.0
    %v665 = vmax.f32 %v649, 0.0
    %v666 = vmax.f32 %v650, %v652
    %v667 = vmax.f32 %v651, %v653
    %v668 = vmax.f32 %v666, %v654
    %v669 = vmax.f32 %v667, %v655
    %v670 = vmax.f32 %v668, %v656
    %v671 = vmax.f32 %v669, %v657
    %v672 = vmax.f32 %v670, %v658
    %v673 = vmax.f32 %v671, %v659
    %v674 = vmax.f32 %v672, %v660
    %v675 = vmax.f32 %v673, %v661
    %v676 = vmax.f32 %v674, %v662
    %v677 = vmax.f32 %v675, %v663
    %v678 = vmax.f32 %v676, %v664
    %v679 = vmax.f32 %v677, %v665
    %v680 = vld [vmem:[%s1] sm:$0xf]
    %v681 = vld [vmem:[%s4] sm:$0xff]
    %v682 = vld [vmem:[%s4 + $0x8] sm:$0xff]
    %v683 = vld [vmem:[%s4 + $0x10] sm:$0xff]
    %v684 = vld [vmem:[%s4 + $0x18] sm:$0xff]
    %v685 = vld [vmem:[%s4 + $0x20] sm:$0xff]
    %v686 = vld [vmem:[%s4 + $0x28] sm:$0xff]
    %v687 = vld [vmem:[%s4 + $0x30] sm:$0xff]
    %v688 = vld [vmem:[%s4 + $0x38] sm:$0xff]
    %v689 = vld [vmem:[%s4 + $0x40] sm:$0xff]
    %v690 = vld [vmem:[%s4 + $0x48] sm:$0xff]
    %v691 = vld [vmem:[%s4 + $0x50] sm:$0xff]
    %v692 = vld [vmem:[%s4 + $0x58] sm:$0xff]
    %v693 = vld [vmem:[%s4 + $0x60] sm:$0xff]
    %v694 = vld [vmem:[%s4 + $0x68] sm:$0xff]
    %v695 = vld [vmem:[%s4 + $0x70] sm:$0xff]
    %v696 = vld [vmem:[%s4 + $0x78] sm:$0xff]
    %v697 = vld [vmem:[%s4 + $0x80] sm:$0xff]
    %v698 = vld [vmem:[%s4 + $0x88] sm:$0xff]
    %v699 = vld [vmem:[%s4 + $0x90] sm:$0xff]
    %v700 = vld [vmem:[%s4 + $0x98] sm:$0xff]
    %v701 = vld [vmem:[%s6] sm:$0x1]
    %v703 = vlaneseq
    %v704 = vshrl.u32 %v703, 7
    %v705 = vsub.s32 0, %v704
    %v706 = vrot.slane %v701, %v705
    %v710 = vunpack.c.l.s4 1983009808
    %v711 = vunpack.c.0.s8 %v710
    %v712 = vlaneseq
    %v713 = vshrl.u32 %v712, 7
    %v714 = vsub.s32 %v711, %v713
    %v715 = vrot.slane %v680, %v714
    %v716 = vcombine.high %v715, %v715
    %vm718 = vcmask 261120
    %v719 = vsel %vm718, %v716, 0
    %721 = vmatprep.subr.mxu0 0.0
    %722 = vmatpush1.msra.mxu0 %v681
    %723 = vmatprep.subr.mxu0 0.0
    %724 = vmatpush1.msra.mxu0 %v682
    %725 = vmatprep.subr.mxu0 0.0
    %726 = vmatpush1.msra.mxu0 %v683
    %727 = vmatprep.subr.mxu0 0.0
    %728 = vmatpush1.msra.mxu0 %v684
    %729 = vmatprep.subr.mxu0 0.0
    %730 = vmatpush1.msra.mxu0 %v685
    %731 = vmatprep.subr.mxu0 0.0
    %732 = vmatpush1.msra.mxu0 %v686
    %733 = vmatprep.subr.mxu0 0.0
    %734 = vmatpush1.msra.mxu0 %v687
    %735 = vmatprep.subr.mxu0 0.0
    %736 = vmatpush1.msra.mxu0 %v688
    %737 = vmatprep.subr.mxu0 0.0
    %738 = vmatpush1.msra.mxu0 %v689
    %739 = vmatprep.subr.mxu0 0.0
    %740 = vmatpush1.msra.mxu0 %v690
    %741 = vmatprep.subr.mxu0 0.0
    %742 = vmatpush1.msra.mxu0 %v691
    %743 = vmatprep.subr.mxu0 0.0
    %744 = vmatpush1.msra.mxu0 %v692
    %745 = vmatprep.subr.mxu0 0.0
    %746 = vmatpush1.msra.mxu0 %v693
    %747 = vmatprep.subr.mxu0 0.0
    %748 = vmatpush1.msra.mxu0 %v694
    %749 = vmatprep.subr.mxu0 0.0
    %750 = vmatpush1.msra.mxu0 %v695
    %751 = vmatprep.subr.mxu0 0.0
    %752 = vmatpush1.msra.mxu0 %v696
    %753 = vmatprep.subr.mxu0 0.0
    %754 = vmatpush1.msra.mxu0 %v697
    %755 = vmatprep.subr.mxu0 0.0
    %756 = vmatpush1.msra.mxu0 %v698
    %757 = vmatprep.subr.mxu0 0.0
    %758 = vmatpush1.msra.mxu0 %v699
    %759 = vmatprep.subr.mxu0 0.0
    %760 = vmatpush1.msra.mxu0 %v700
    %761 = vmatprep.subr.mxu0 0.0
    %762 = vmatpush1.msra.mxu0 0.0
    %763 = vmatprep.subr.mxu0 0.0
    %764 = vmatpush1.msra.mxu0 0.0
    %765 = vmatprep.subr.mxu0 0.0
    %766 = vmatpush1.msra.mxu0 0.0
    %767 = vmatprep.subr.mxu0 0.0
    %768 = vmatpush1.msra.mxu0 0.0
    %769 = vmatprep.subr.mxu0 0.0
    %770 = vmatpush1.msra.mxu0 0.0
    %771 = vmatprep.subr.mxu0 0.0
    %772 = vmatpush1.msra.mxu0 0.0
    %773 = vmatprep.subr.mxu0 0.0
    %774 = vmatpush1.msra.mxu0 0.0
    %775 = vmatprep.subr.mxu0 0.0
    %776 = vmatpush1.msra.mxu0 0.0
    %777 = vmatprep.subr.mxu0 0.0
    %778 = vmatpush1.msra.mxu0 0.0
    %779 = vmatprep.subr.mxu0 0.0
    %780 = vmatpush1.msra.mxu0 0.0
    %781 = vmatprep.subr.mxu0 0.0
    %782 = vmatpush1.msra.mxu0 0.0
    %783 = vmatprep.subr.mxu0 0.0
    %784 = vmatpush1.msra.mxu0 0.0
    %785 = vmatprep.mubr.f32.mxu0 %v719
    %786 = vmatmul.mubr.f32.gmra.mrb[0].mxu0 %v715
    %v787 = vpop.f32.mrb[0].mxu0
    %v788 = vadd.f32 %v706, %v787
    %v789 = vpop.f32.mrb[0].mxu0
    %790 = vdwg.mxu0
    %v791 = vld [vmem:[%s5] sm:$0xff]
    %v792 = vld [vmem:[%s5 + $0x8] sm:$0xff]
    %v793 = vld [vmem:[%s5 + $0x10] sm:$0xff]
    %v794 = vld [vmem:[%s5 + $0x18] sm:$0xff]
    %v795 = vld [vmem:[%s5 + $0x20] sm:$0xff]
    %v796 = vld [vmem:[%s5 + $0x28] sm:$0xff]
    %v797 = vld [vmem:[%s5 + $0x30] sm:$0xff]
    %v798 = vld [vmem:[%s5 + $0x38] sm:$0xff]
    %v799 = vld [vmem:[%s5 + $0x40] sm:$0xff]
    %v800 = vld [vmem:[%s5 + $0x48] sm:$0xff]
    %v801 = vld [vmem:[%s5 + $0x50] sm:$0xff]
    %v802 = vld [vmem:[%s5 + $0x58] sm:$0xff]
    %v803 = vld [vmem:[%s5 + $0x60] sm:$0xff]
    %v804 = vld [vmem:[%s5 + $0x68] sm:$0xff]
    %v805 = vld [vmem:[%s5 + $0x70] sm:$0xff]
    %v806 = vld [vmem:[%s5 + $0x78] sm:$0xff]
    %807 = vmatprep.subr.mxu0 0.0
    %808 = vmatpush1.msra.mxu0 %v791
    %809 = vmatprep.subr.mxu0 0.0
    %810 = vmatpush1.msra.mxu0 %v792
    %811 = vmatprep.subr.mxu0 0.0
    %812 = vmatpush1.msra.mxu0 %v793
    %813 = vmatprep.subr.mxu0 0.0
    %814 = vmatpush1.msra.mxu0 %v794
    %815 = vmatprep.subr.mxu0 0.0
    %816 = vmatpush1.msra.mxu0 %v795
    %817 = vmatprep.subr.mxu0 0.0
    %818 = vmatpush1.msra.mxu0 %v796
    %819 = vmatprep.subr.mxu0 0.0
    %820 = vmatpush1.msra.mxu0 %v797
    %821 = vmatprep.subr.mxu0 0.0
    %822 = vmatpush1.msra.mxu0 %v798
    %823 = vmatprep.subr.mxu0 0.0
    %824 = vmatpush1.msra.mxu0 %v799
    %825 = vmatprep.subr.mxu0 0.0
    %826 = vmatpush1.msra.mxu0 %v800
    %827 = vmatprep.subr.mxu0 0.0
    %828 = vmatpush1.msra.mxu0 %v801
    %829 = vmatprep.subr.mxu0 0.0
    %830 = vmatpush1.msra.mxu0 %v802
    %831 = vmatprep.subr.mxu0 0.0
    %832 = vmatpush1.msra.mxu0 %v803
    %833 = vmatprep.subr.mxu0 0.0
    %834 = vmatpush1.msra.mxu0 %v804
    %835 = vmatprep.subr.mxu0 0.0
    %836 = vmatpush1.msra.mxu0 %v805
    %837 = vmatprep.subr.mxu0 0.0
    %838 = vmatpush1.msra.mxu0 %v806
    %839 = vmatprep.subr.mxu0 0.0
    %840 = vmatpush1.msra.mxu0 0.0
    %841 = vmatprep.subr.mxu0 0.0
    %842 = vmatpush1.msra.mxu0 0.0
    %843 = vmatprep.subr.mxu0 0.0
    %844 = vmatpush1.msra.mxu0 0.0
    %845 = vmatprep.subr.mxu0 0.0
    %846 = vmatpush1.msra.mxu0 0.0
    %847 = vmatprep.subr.mxu0 0.0
    %848 = vmatpush1.msra.mxu0 0.0
    %849 = vmatprep.subr.mxu0 0.0
    %850 = vmatpush1.msra.mxu0 0.0
    %851 = vmatprep.subr.mxu0 0.0
    %852 = vmatpush1.msra.mxu0 0.0
    %853 = vmatprep.subr.mxu0 0.0
    %854 = vmatpush1.msra.mxu0 0.0
    %855 = vmatprep.subr.mxu0 0.0
    %856 = vmatpush1.msra.mxu0 0.0
    %857 = vmatprep.subr.mxu0 0.0
    %858 = vmatpush1.msra.mxu0 0.0
    %859 = vmatprep.subr.mxu0 0.0
    %860 = vmatpush1.msra.mxu0 0.0
    %861 = vmatprep.subr.mxu0 0.0
    %862 = vmatpush1.msra.mxu0 0.0
    %863 = vmatprep.subr.mxu0 0.0
    %864 = vmatpush1.msra.mxu0 0.0
    %865 = vmatprep.subr.mxu0 0.0
    %866 = vmatpush1.msra.mxu0 0.0
    %867 = vmatprep.subr.mxu0 0.0
    %868 = vmatpush1.msra.mxu0 0.0
    %869 = vmatprep.subr.mxu0 0.0
    %870 = vmatpush1.msra.mxu0 0.0
    %871 = vmatprep.mubr.f32.mxu0 0.0
    %872 = vmatmul.mubr.f32.gmra.mrb[0].mxu0 %v678
    %v873 = vpop.f32.mrb[0].mxu0
    %v874 = vadd.f32 0.0, %v873
    %v875 = vpop.f32.mrb[0].mxu0
    %876 = vdwg.mxu0
    %v877 = vadd.f32 %v788, %v874
    %v878 = vld [vmem:[%s5 + $0x80] sm:$0xff]
    %v879 = vld [vmem:[%s5 + $0x88] sm:$0xff]
    %v880 = vld [vmem:[%s5 + $0x90] sm:$0xff]
    %v881 = vld [vmem:[%s5 + $0x98] sm:$0xff]
    %v882 = vld [vmem:[%s5 + $0xa0] sm:$0xff]
    %v883 = vld [vmem:[%s5 + $0xa8] sm:$0xff]
    %v884 = vld [vmem:[%s5 + $0xb0] sm:$0xff]
    %v885 = vld [vmem:[%s5 + $0xb8] sm:$0xff]
    %v886 = vld [vmem:[%s5 + $0xc0] sm:$0xff]
    %v887 = vld [vmem:[%s5 + $0xc8] sm:$0xff]
    %v888 = vld [vmem:[%s5 + $0xd0] sm:$0xff]
    %v889 = vld [vmem:[%s5 + $0xd8] sm:$0xff]
    %v890 = vld [vmem:[%s5 + $0xe0] sm:$0xff]
    %v891 = vld [vmem:[%s5 + $0xe8] sm:$0xff]
    %v892 = vld [vmem:[%s5 + $0xf0] sm:$0xff]
    %v893 = vld [vmem:[%s5 + $0xf8] sm:$0xff]
    %v895 = vrot.slane %v678, 2
    %897 = vmatprep.subr.mxu0 0.0
    %898 = vmatpush1.msra.mxu0 %v878
    %899 = vmatprep.subr.mxu0 0.0
    %900 = vmatpush1.msra.mxu0 %v879
    %901 = vmatprep.subr.mxu0 0.0
    %902 = vmatpush1.msra.mxu0 %v880
    %903 = vmatprep.subr.mxu0 0.0
    %904 = vmatpush1.msra.mxu0 %v881
    %905 = vmatprep.subr.mxu0 0.0
    %906 = vmatpush1.msra.mxu0 %v882
    %907 = vmatprep.subr.mxu0 0.0
    %908 = vmatpush1.msra.mxu0 %v883
    %909 = vmatprep.subr.mxu0 0.0
    %910 = vmatpush1.msra.mxu0 %v884
    %911 = vmatprep.subr.mxu0 0.0
    %912 = vmatpush1.msra.mxu0 %v885
    %913 = vmatprep.subr.mxu0 0.0
    %914 = vmatpush1.msra.mxu0 %v886
    %915 = vmatprep.subr.mxu0 0.0
    %916 = vmatpush1.msra.mxu0 %v887
    %917 = vmatprep.subr.mxu0 0.0
    %918 = vmatpush1.msra.mxu0 %v888
    %919 = vmatprep.subr.mxu0 0.0
    %920 = vmatpush1.msra.mxu0 %v889
    %921 = vmatprep.subr.mxu0 0.0
    %922 = vmatpush1.msra.mxu0 %v890
    %923 = vmatprep.subr.mxu0 0.0
    %924 = vmatpush1.msra.mxu0 %v891
    %925 = vmatprep.subr.mxu0 0.0
    %926 = vmatpush1.msra.mxu0 %v892
    %927 = vmatprep.subr.mxu0 0.0
    %928 = vmatpush1.msra.mxu0 %v893
    %929 = vmatprep.subr.mxu0 0.0
    %930 = vmatpush1.msra.mxu0 0.0
    %931 = vmatprep.subr.mxu0 0.0
    %932 = vmatpush1.msra.mxu0 0.0
    %933 = vmatprep.subr.mxu0 0.0
    %934 = vmatpush1.msra.mxu0 0.0
    %935 = vmatprep.subr.mxu0 0.0
    %936 = vmatpush1.msra.mxu0 0.0
    %937 = vmatprep.subr.mxu0 0.0
    %938 = vmatpush1.msra.mxu0 0.0
    %939 = vmatprep.subr.mxu0 0.0
    %940 = vmatpush1.msra.mxu0 0.0
    %941 = vmatprep.subr.mxu0 0.0
    %942 = vmatpush1.msra.mxu0 0.0
    %943 = vmatprep.subr.mxu0 0.0
    %944 = vmatpush1.msra.mxu0 0.0
    %945 = vmatprep.subr.mxu0 0.0
    %946 = vmatpush1.msra.mxu0 0.0
    %947 = vmatprep.subr.mxu0 0.0
    %948 = vmatpush1.msra.mxu0 0.0
    %949 = vmatprep.subr.mxu0 0.0
    %950 = vmatpush1.msra.mxu0 0.0
    %951 = vmatprep.subr.mxu0 0.0
    %952 = vmatpush1.msra.mxu0 0.0
    %953 = vmatprep.subr.mxu0 0.0
    %954 = vmatpush1.msra.mxu0 0.0
    %955 = vmatprep.subr.mxu0 0.0
    %956 = vmatpush1.msra.mxu0 0.0
    %957 = vmatprep.subr.mxu0 0.0
    %958 = vmatpush1.msra.mxu0 0.0
    %959 = vmatprep.subr.mxu0 0.0
    %960 = vmatpush1.msra.mxu0 0.0
    %961 = vmatprep.mubr.f32.mxu0 0.0
    %962 = vmatmul.mubr.f32.gmra.mrb[0].mxu0 %v895
    %v963 = vpop.f32.mrb[0].mxu0
    %v964 = vadd.f32 0.0, %v963
    %v965 = vpop.f32.mrb[0].mxu0
    %966 = vdwg.mxu0
    %v967 = vadd.f32 %v877, %v964
    %v968 = vld [vmem:[%s5 + $0x100] sm:$0xff]
    %v969 = vld [vmem:[%s5 + $0x108] sm:$0xff]
    %v970 = vld [vmem:[%s5 + $0x110] sm:$0xff]
    %v971 = vld [vmem:[%s5 + $0x118] sm:$0xff]
    %v972 = vld [vmem:[%s5 + $0x120] sm:$0xff]
    %v973 = vld [vmem:[%s5 + $0x128] sm:$0xff]
    %v974 = vld [vmem:[%s5 + $0x130] sm:$0xff]
    %v975 = vld [vmem:[%s5 + $0x138] sm:$0xff]
    %v976 = vld [vmem:[%s5 + $0x140] sm:$0xff]
    %v977 = vld [vmem:[%s5 + $0x148] sm:$0xff]
    %v978 = vld [vmem:[%s5 + $0x150] sm:$0xff]
    %v979 = vld [vmem:[%s5 + $0x158] sm:$0xff]
    %v980 = vld [vmem:[%s5 + $0x160] sm:$0xff]
    %v981 = vld [vmem:[%s5 + $0x168] sm:$0xff]
    %v982 = vld [vmem:[%s5 + $0x170] sm:$0xff]
    %v983 = vld [vmem:[%s5 + $0x178] sm:$0xff]
    %v984 = vrot.slane %v678, 4
    %986 = vmatprep.subr.mxu0 0.0
    %987 = vmatpush1.msra.mxu0 %v968
    %988 = vmatprep.subr.mxu0 0.0
    %989 = vmatpush1.msra.mxu0 %v969
    %990 = vmatprep.subr.mxu0 0.0
    %991 = vmatpush1.msra.mxu0 %v970
    %992 = vmatprep.subr.mxu0 0.0
    %993 = vmatpush1.msra.mxu0 %v971
    %994 = vmatprep.subr.mxu0 0.0
    %995 = vmatpush1.msra.mxu0 %v972
    %996 = vmatprep.subr.mxu0 0.0
    %997 = vmatpush1.msra.mxu0 %v973
    %998 = vmatprep.subr.mxu0 0.0
    %999 = vmatpush1.msra.mxu0 %v974
    %1000 = vmatprep.subr.mxu0 0.0
    %1001 = vmatpush1.msra.mxu0 %v975
    %1002 = vmatprep.subr.mxu0 0.0
    %1003 = vmatpush1.msra.mxu0 %v976
    %1004 = vmatprep.subr.mxu0 0.0
    %1005 = vmatpush1.msra.mxu0 %v977
    %1006 = vmatprep.subr.mxu0 0.0
    %1007 = vmatpush1.msra.mxu0 %v978
    %1008 = vmatprep.subr.mxu0 0.0
    %1009 = vmatpush1.msra.mxu0 %v979
    %1010 = vmatprep.subr.mxu0 0.0
    %1011 = vmatpush1.msra.mxu0 %v980
    %1012 = vmatprep.subr.mxu0 0.0
    %1013 = vmatpush1.msra.mxu0 %v981
    %1014 = vmatprep.subr.mxu0 0.0
    %1015 = vmatpush1.msra.mxu0 %v982
    %1016 = vmatprep.subr.mxu0 0.0
    %1017 = vmatpush1.msra.mxu0 %v983
    %1018 = vmatprep.subr.mxu0 0.0
    %1019 = vmatpush1.msra.mxu0 0.0
    %1020 = vmatprep.subr.mxu0 0.0
    %1021 = vmatpush1.msra.mxu0 0.0
    %1022 = vmatprep.subr.mxu0 0.0
    %1023 = vmatpush1.msra.mxu0 0.0
    %1024 = vmatprep.subr.mxu0 0.0
    %1025 = vmatpush1.msra.mxu0 0.0
    %1026 = vmatprep.subr.mxu0 0.0
    %1027 = vmatpush1.msra.mxu0 0.0
    %1028 = vmatprep.subr.mxu0 0.0
    %1029 = vmatpush1.msra.mxu0 0.0
    %1030 = vmatprep.subr.mxu0 0.0
    %1031 = vmatpush1.msra.mxu0 0.0
    %1032 = vmatprep.subr.mxu0 0.0
    %1033 = vmatpush1.msra.mxu0 0.0
    %1034 = vmatprep.subr.mxu0 0.0
    %1035 = vmatpush1.msra.mxu0 0.0
    %1036 = vmatprep.subr.mxu0 0.0
    %1037 = vmatpush1.msra.mxu0 0.0
    %1038 = vmatprep.subr.mxu0 0.0
    %1039 = vmatpush1.msra.mxu0 0.0
    %1040 = vmatprep.subr.mxu0 0.0
    %1041 = vmatpush1.msra.mxu0 0.0
    %1042 = vmatprep.subr.mxu0 0.0
    %1043 = vmatpush1.msra.mxu0 0.0
    %1044 = vmatprep.subr.mxu0 0.0
    %1045 = vmatpush1.msra.mxu0 0.0
    %1046 = vmatprep.subr.mxu0 0.0
    %1047 = vmatpush1.msra.mxu0 0.0
    %1048 = vmatprep.subr.mxu0 0.0
    %1049 = vmatpush1.msra.mxu0 0.0
    %1050 = vmatprep.mubr.f32.mxu0 0.0
    %1051 = vmatmul.mubr.f32.gmra.mrb[0].mxu0 %v984
    %v1052 = vpop.f32.mrb[0].mxu0
    %v1053 = vadd.f32 0.0, %v1052
    %v1054 = vpop.f32.mrb[0].mxu0
    %1055 = vdwg.mxu0
    %v1056 = vadd.f32 %v967, %v1053
    %v1057 = vld [vmem:[%s5 + $0x180] sm:$0xff]
    %v1058 = vld [vmem:[%s5 + $0x188] sm:$0xff]
    %v1059 = vld [vmem:[%s5 + $0x190] sm:$0xff]
    %v1060 = vld [vmem:[%s5 + $0x198] sm:$0xff]
    %v1061 = vld [vmem:[%s5 + $0x1a0] sm:$0xff]
    %v1062 = vld [vmem:[%s5 + $0x1a8] sm:$0xff]
    %v1063 = vld [vmem:[%s5 + $0x1b0] sm:$0xff]
    %v1064 = vld [vmem:[%s5 + $0x1b8] sm:$0xff]
    %v1065 = vld [vmem:[%s5 + $0x1c0] sm:$0xff]
    %v1066 = vld [vmem:[%s5 + $0x1c8] sm:$0xff]
    %v1067 = vld [vmem:[%s5 + $0x1d0] sm:$0xff]
    %v1068 = vld [vmem:[%s5 + $0x1d8] sm:$0xff]
    %v1069 = vld [vmem:[%s5 + $0x1e0] sm:$0xff]
    %v1070 = vld [vmem:[%s5 + $0x1e8] sm:$0xff]
    %v1071 = vld [vmem:[%s5 + $0x1f0] sm:$0xff]
    %v1072 = vld [vmem:[%s5 + $0x1f8] sm:$0xff]
    %v1073 = vrot.slane %v678, 6
    %1075 = vmatprep.subr.mxu0 0.0
    %1076 = vmatpush1.msra.mxu0 %v1057
    %1077 = vmatprep.subr.mxu0 0.0
    %1078 = vmatpush1.msra.mxu0 %v1058
    %1079 = vmatprep.subr.mxu0 0.0
    %1080 = vmatpush1.msra.mxu0 %v1059
    %1081 = vmatprep.subr.mxu0 0.0
    %1082 = vmatpush1.msra.mxu0 %v1060
    %1083 = vmatprep.subr.mxu0 0.0
    %1084 = vmatpush1.msra.mxu0 %v1061
    %1085 = vmatprep.subr.mxu0 0.0
    %1086 = vmatpush1.msra.mxu0 %v1062
    %1087 = vmatprep.subr.mxu0 0.0
    %1088 = vmatpush1.msra.mxu0 %v1063
    %1089 = vmatprep.subr.mxu0 0.0
    %1090 = vmatpush1.msra.mxu0 %v1064
    %1091 = vmatprep.subr.mxu0 0.0
    %1092 = vmatpush1.msra.mxu0 %v1065
    %1093 = vmatprep.subr.mxu0 0.0
    %1094 = vmatpush1.msra.mxu0 %v1066
    %1095 = vmatprep.subr.mxu0 0.0
    %1096 = vmatpush1.msra.mxu0 %v1067
    %1097 = vmatprep.subr.mxu0 0.0
    %1098 = vmatpush1.msra.mxu0 %v1068
    %1099 = vmatprep.subr.mxu0 0.0
    %1100 = vmatpush1.msra.mxu0 %v1069
    %1101 = vmatprep.subr.mxu0 0.0
    %1102 = vmatpush1.msra.mxu0 %v1070
    %1103 = vmatprep.subr.mxu0 0.0
    %1104 = vmatpush1.msra.mxu0 %v1071
    %1105 = vmatprep.subr.mxu0 0.0
    %1106 = vmatpush1.msra.mxu0 %v1072
    %1107 = vmatprep.subr.mxu0 0.0
    %1108 = vmatpush1.msra.mxu0 0.0
    %1109 = vmatprep.subr.mxu0 0.0
    %1110 = vmatpush1.msra.mxu0 0.0
    %1111 = vmatprep.subr.mxu0 0.0
    %1112 = vmatpush1.msra.mxu0 0.0
    %1113 = vmatprep.subr.mxu0 0.0
    %1114 = vmatpush1.msra.mxu0 0.0
    %1115 = vmatprep.subr.mxu0 0.0
    %1116 = vmatpush1.msra.mxu0 0.0
    %1117 = vmatprep.subr.mxu0 0.0
    %1118 = vmatpush1.msra.mxu0 0.0
    %1119 = vmatprep.subr.mxu0 0.0
    %1120 = vmatpush1.msra.mxu0 0.0
    %1121 = vmatprep.subr.mxu0 0.0
    %1122 = vmatpush1.msra.mxu0 0.0
    %1123 = vmatprep.subr.mxu0 0.0
    %1124 = vmatpush1.msra.mxu0 0.0
    %1125 = vmatprep.subr.mxu0 0.0
    %1126 = vmatpush1.msra.mxu0 0.0
    %1127 = vmatprep.subr.mxu0 0.0
    %1128 = vmatpush1.msra.mxu0 0.0
    %1129 = vmatprep.subr.mxu0 0.0
    %1130 = vmatpush1.msra.mxu0 0.0
    %1131 = vmatprep.subr.mxu0 0.0
    %1132 = vmatpush1.msra.mxu0 0.0
    %1133 = vmatprep.subr.mxu0 0.0
    %1134 = vmatpush1.msra.mxu0 0.0
    %1135 = vmatprep.subr.mxu0 0.0
    %1136 = vmatpush1.msra.mxu0 0.0
    %1137 = vmatprep.subr.mxu0 0.0
    %1138 = vmatpush1.msra.mxu0 0.0
    %1139 = vmatprep.mubr.f32.mxu0 0.0
    %1140 = vmatmul.mubr.f32.gmra.mrb[0].mxu0 %v1073
    %v1141 = vpop.f32.mrb[0].mxu0
    %v1142 = vadd.f32 0.0, %v1141
    %v1143 = vpop.f32.mrb[0].mxu0
    %1144 = vdwg.mxu0
    %v1145 = vadd.f32 %v1056, %v1142
    %v1146 = vld [vmem:[%s5 + $0x200] sm:$0xff]
    %v1147 = vld [vmem:[%s5 + $0x208] sm:$0xff]
    %v1148 = vld [vmem:[%s5 + $0x210] sm:$0xff]
    %v1149 = vld [vmem:[%s5 + $0x218] sm:$0xff]
    %v1150 = vld [vmem:[%s5 + $0x220] sm:$0xff]
    %v1151 = vld [vmem:[%s5 + $0x228] sm:$0xff]
    %v1152 = vld [vmem:[%s5 + $0x230] sm:$0xff]
    %v1153 = vld [vmem:[%s5 + $0x238] sm:$0xff]
    %v1154 = vld [vmem:[%s5 + $0x240] sm:$0xff]
    %v1155 = vld [vmem:[%s5 + $0x248] sm:$0xff]
    %v1156 = vld [vmem:[%s5 + $0x250] sm:$0xff]
    %v1157 = vld [vmem:[%s5 + $0x258] sm:$0xff]
    %v1158 = vld [vmem:[%s5 + $0x260] sm:$0xff]
    %v1159 = vld [vmem:[%s5 + $0x268] sm:$0xff]
    %v1160 = vld [vmem:[%s5 + $0x270] sm:$0xff]
    %v1161 = vld [vmem:[%s5 + $0x278] sm:$0xff]
    %1162 = vmatprep.subr.mxu0 0.0
    %1163 = vmatpush1.msra.mxu0 %v1146
    %1164 = vmatprep.subr.mxu0 0.0
    %1165 = vmatpush1.msra.mxu0 %v1147
    %1166 = vmatprep.subr.mxu0 0.0
    %1167 = vmatpush1.msra.mxu0 %v1148
    %1168 = vmatprep.subr.mxu0 0.0
    %1169 = vmatpush1.msra.mxu0 %v1149
    %1170 = vmatprep.subr.mxu0 0.0
    %1171 = vmatpush1.msra.mxu0 %v1150
    %1172 = vmatprep.subr.mxu0 0.0
    %1173 = vmatpush1.msra.mxu0 %v1151
    %1174 = vmatprep.subr.mxu0 0.0
    %1175 = vmatpush1.msra.mxu0 %v1152
    %1176 = vmatprep.subr.mxu0 0.0
    %1177 = vmatpush1.msra.mxu0 %v1153
    %1178 = vmatprep.subr.mxu0 0.0
    %1179 = vmatpush1.msra.mxu0 %v1154
    %1180 = vmatprep.subr.mxu0 0.0
    %1181 = vmatpush1.msra.mxu0 %v1155
    %1182 = vmatprep.subr.mxu0 0.0
    %1183 = vmatpush1.msra.mxu0 %v1156
    %1184 = vmatprep.subr.mxu0 0.0
    %1185 = vmatpush1.msra.mxu0 %v1157
    %1186 = vmatprep.subr.mxu0 0.0
    %1187 = vmatpush1.msra.mxu0 %v1158
    %1188 = vmatprep.subr.mxu0 0.0
    %1189 = vmatpush1.msra.mxu0 %v1159
    %1190 = vmatprep.subr.mxu0 0.0
    %1191 = vmatpush1.msra.mxu0 %v1160
    %1192 = vmatprep.subr.mxu0 0.0
    %1193 = vmatpush1.msra.mxu0 %v1161
    %1194 = vmatprep.subr.mxu0 0.0
    %1195 = vmatpush1.msra.mxu0 0.0
    %1196 = vmatprep.subr.mxu0 0.0
    %1197 = vmatpush1.msra.mxu0 0.0
    %1198 = vmatprep.subr.mxu0 0.0
    %1199 = vmatpush1.msra.mxu0 0.0
    %1200 = vmatprep.subr.mxu0 0.0
    %1201 = vmatpush1.msra.mxu0 0.0
    %1202 = vmatprep.subr.mxu0 0.0
    %1203 = vmatpush1.msra.mxu0 0.0
    %1204 = vmatprep.subr.mxu0 0.0
    %1205 = vmatpush1.msra.mxu0 0.0
    %1206 = vmatprep.subr.mxu0 0.0
    %1207 = vmatpush1.msra.mxu0 0.0
    %1208 = vmatprep.subr.mxu0 0.0
    %1209 = vmatpush1.msra.mxu0 0.0
    %1210 = vmatprep.subr.mxu0 0.0
    %1211 = vmatpush1.msra.mxu0 0.0
    %1212 = vmatprep.subr.mxu0 0.0
    %1213 = vmatpush1.msra.mxu0 0.0
    %1214 = vmatprep.subr.mxu0 0.0
    %1215 = vmatpush1.msra.mxu0 0.0
    %1216 = vmatprep.subr.mxu0 0.0
    %1217 = vmatpush1.msra.mxu0 0.0
    %1218 = vmatprep.subr.mxu0 0.0
    %1219 = vmatpush1.msra.mxu0 0.0
    %1220 = vmatprep.subr.mxu0 0.0
    %1221 = vmatpush1.msra.mxu0 0.0
    %1222 = vmatprep.subr.mxu0 0.0
    %1223 = vmatpush1.msra.mxu0 0.0
    %1224 = vmatprep.subr.mxu0 0.0
    %1225 = vmatpush1.msra.mxu0 0.0
    %1226 = vmatprep.mubr.f32.mxu0 0.0
    %1227 = vmatmul.mubr.f32.gmra.mrb[0].mxu0 %v679
    %v1228 = vpop.f32.mrb[0].mxu0
    %v1229 = vadd.f32 0.0, %v1228
    %v1230 = vpop.f32.mrb[0].mxu0
    %1231 = vdwg.mxu0
    %v1232 = vadd.f32 %v1145, %v1229
    %v1233 = vtanh.pop %v1232
    %v1234 = vld [vmem:[%s7] sm:$0xff]
    %v1235 = vld [vmem:[%s7 + $0x8] sm:$0xff]
    %v1236 = vld [vmem:[%s7 + $0x10] sm:$0xff]
    %v1237 = vld [vmem:[%s7 + $0x18] sm:$0xff]
    %v1238 = vld [vmem:[%s7 + $0x20] sm:$0xff]
    %v1239 = vld [vmem:[%s7 + $0x28] sm:$0xff]
    %v1240 = vld [vmem:[%s7 + $0x30] sm:$0xff]
    %v1241 = vld [vmem:[%s7 + $0x38] sm:$0xff]
    %v1242 = vld [vmem:[%s7 + $0x40] sm:$0xff]
    %v1243 = vld [vmem:[%s7 + $0x48] sm:$0xff]
    %v1244 = vld [vmem:[%s7 + $0x50] sm:$0xff]
    %v1245 = vld [vmem:[%s7 + $0x58] sm:$0xff]
    %v1246 = vld [vmem:[%s7 + $0x60] sm:$0xff]
    %v1247 = vld [vmem:[%s7 + $0x68] sm:$0xff]
    %v1248 = vld [vmem:[%s7 + $0x70] sm:$0xff]
    %v1249 = vld [vmem:[%s7 + $0x78] sm:$0xff]
    %v1250 = vld [vmem:[%s8] sm:$0x1]
    %v1252 = vlaneseq
    %v1253 = vshrl.u32 %v1252, 7
    %v1254 = vsub.s32 0, %v1253
    %v1255 = vrot.slane %v1250, %v1254
    %1257 = vmatprep.subr.mxu0 0.0
    %1258 = vmatpush1.msra.mxu0 %v1234
    %1259 = vmatprep.subr.mxu0 0.0
    %1260 = vmatpush1.msra.mxu0 %v1235
    %1261 = vmatprep.subr.mxu0 0.0
    %1262 = vmatpush1.msra.mxu0 %v1236
    %1263 = vmatprep.subr.mxu0 0.0
    %1264 = vmatpush1.msra.mxu0 %v1237
    %1265 = vmatprep.subr.mxu0 0.0
    %1266 = vmatpush1.msra.mxu0 %v1238
    %1267 = vmatprep.subr.mxu0 0.0
    %1268 = vmatpush1.msra.mxu0 %v1239
    %1269 = vmatprep.subr.mxu0 0.0
    %1270 = vmatpush1.msra.mxu0 %v1240
    %1271 = vmatprep.subr.mxu0 0.0
    %1272 = vmatpush1.msra.mxu0 %v1241
    %1273 = vmatprep.subr.mxu0 0.0
    %1274 = vmatpush1.msra.mxu0 %v1242
    %1275 = vmatprep.subr.mxu0 0.0
    %1276 = vmatpush1.msra.mxu0 %v1243
    %1277 = vmatprep.subr.mxu0 0.0
    %1278 = vmatpush1.msra.mxu0 %v1244
    %1279 = vmatprep.subr.mxu0 0.0
    %1280 = vmatpush1.msra.mxu0 %v1245
    %1281 = vmatprep.subr.mxu0 0.0
    %1282 = vmatpush1.msra.mxu0 %v1246
    %1283 = vmatprep.subr.mxu0 0.0
    %1284 = vmatpush1.msra.mxu0 %v1247
    %1285 = vmatprep.subr.mxu0 0.0
    %1286 = vmatpush1.msra.mxu0 %v1248
    %1287 = vmatprep.subr.mxu0 0.0
    %1288 = vmatpush1.msra.mxu0 %v1249
    %1289 = vmatprep.subr.mxu0 0.0
    %1290 = vmatpush1.msra.mxu0 0.0
    %1291 = vmatprep.subr.mxu0 0.0
    %1292 = vmatpush1.msra.mxu0 0.0
    %1293 = vmatprep.subr.mxu0 0.0
    %1294 = vmatpush1.msra.mxu0 0.0
    %1295 = vmatprep.subr.mxu0 0.0
    %1296 = vmatpush1.msra.mxu0 0.0
    %1297 = vmatprep.subr.mxu0 0.0
    %1298 = vmatpush1.msra.mxu0 0.0
    %1299 = vmatprep.subr.mxu0 0.0
    %1300 = vmatpush1.msra.mxu0 0.0
    %1301 = vmatprep.subr.mxu0 0.0
    %1302 = vmatpush1.msra.mxu0 0.0
    %1303 = vmatprep.subr.mxu0 0.0
    %1304 = vmatpush1.msra.mxu0 0.0
    %1305 = vmatprep.subr.mxu0 0.0
    %1306 = vmatpush1.msra.mxu0 0.0
    %1307 = vmatprep.subr.mxu0 0.0
    %1308 = vmatpush1.msra.mxu0 0.0
    %1309 = vmatprep.subr.mxu0 0.0
    %1310 = vmatpush1.msra.mxu0 0.0
    %1311 = vmatprep.subr.mxu0 0.0
    %1312 = vmatpush1.msra.mxu0 0.0
    %1313 = vmatprep.subr.mxu0 0.0
    %1314 = vmatpush1.msra.mxu0 0.0
    %1315 = vmatprep.subr.mxu0 0.0
    %1316 = vmatpush1.msra.mxu0 0.0
    %1317 = vmatprep.subr.mxu0 0.0
    %1318 = vmatpush1.msra.mxu0 0.0
    %1319 = vmatprep.subr.mxu0 0.0
    %1320 = vmatpush1.msra.mxu0 0.0
    %1321 = vmatprep.mubr.f32.mxu0 0.0
    %1322 = vmatmul.mubr.f32.gmra.mrb[0].mxu0 %v1233
    %v1323 = vpop.f32.mrb[0].mxu0
    %v1324 = vadd.f32 %v1255, %v1323
    %v1325 = vpop.f32.mrb[0].mxu0
    %1326 = vdwg.mxu0
    %1327 = vst [vmem:[#allocation2] sm:$0x3] %v1324
    // Predicated region
    $region38: #{tagger_forward.1} parent=1 // pred_check
      _
    $region39: #{tagger_forward.1} parent=1 // pred_check_branch
      %1329 = sbr.rel (0) target = $region41
    $region40: #{tagger_forward.1} parent=1 // pred_region
      %s1331 = ssub.s32 32, 32
      %1332 = vsyncadd [#allocation3], %s1331
      %s1334 = sshll.u32 [#allocation2], 4
      %s1335 = int_to_ptr.vmem [resolvable:$true] %s1334
      %1337 = dma.vmem_to_hbm [thread:$0]  %s1335, 32, %s9, [#allocation3]
    $region41: #{tagger_forward.1} parent=1 // pred_fallthru
      _
    // Predicated region
    $region42: #{tagger_forward.1} parent=1 // pred_check
      _
    $region43: #{tagger_forward.1} parent=1 // pred_check_branch
      %1339 = sbr.rel (0) target = $region45
    $region44: #{tagger_forward.1} parent=1 // pred_region
      %1340 = dma.done [#allocation3], 32
    $region45: #{tagger_forward.1} parent=1 // pred_fallthru
      _
    %1341 = vsyncpa [#allocation3], 1

</llo_original>
